<compile_context>
chip_gen: v7x
topology: tpu7x:2x2x1
jax: 0.10.0
libtpu: 0.0.40
codegen_flags: <defaults>
</compile_context>

<pallas_src>
import jax
import jax.numpy as jnp
from jax.experimental import pallas as pl
from jax.experimental.pallas import tpu as pltpu

_BN_EPS = 1e-5


def _fold_bn(gamma, beta, mean, var, eps=_BN_EPS):
    scale = gamma / jnp.sqrt(var + eps)
    bias = beta - mean * scale
    return (scale.reshape(-1, 1).astype(jnp.float32),
            bias.reshape(-1, 1).astype(jnp.float32))


def _pick_tile_rows(ho, wpx, target_lanes=4096):
    """Output rows per grid step: divides Ho, multiple of 8 (or == Ho), bounded VMEM."""
    if ho * wpx <= target_lanes:
        return ho
    best = None
    for th in range(8, ho, 8):
        if ho % th == 0 and th * wpx <= target_lanes:
            best = th
    return best if best is not None else ho


# ----------------------------------------------------------------------------
# Fused kernel: stem conv + BN + hswish + Block (1x1 -> dw3x3 -> 1x1 + residual)
# All spatial tensors are flattened row-major with an internal padded row width
# Wpx = Wo + 3, so depthwise taps / residual are static lane-shifted slices.
# ----------------------------------------------------------------------------
def _make_stem_block_kernel(C, Cin, TH, Wpx, Wo, Ho):
    SB = (TH + 3) * Wpx     # stem/expand buffer: rows r0-1 .. r0+TH (+ spare), width Wpx
    ST = TH * Wpx           # working buffer for the TH output rows

    def kernel(xwin_ref, w4_ref, s0_ref, b0_ref,
               wb1_ref, s1_ref, b1_ref,
               wdw_ref, s2_ref, b2_ref,
               wb3_ref, s3_ref, b3_ref,
               colmask_ref, rowid_ref, o_ref):
        r0 = pl.program_id(1) * TH                 # first output row of this tile

        xw = xwin_ref[0, 0]                        # (4*Cin, SW) bf16 phase window

        # ---- stem 3x3 stride-2 conv: 4 offset-group matmuls on the MXU (bf16 -> f32) ----
        acc = None
        for g, (gh, gw) in enumerate(((0, 0), (0, 1), (1, 0), (1, 1))):
            off = gh * Wpx + gw
            part = jnp.dot(w4_ref[g], xw[:, off:off + SB],
                           preferred_element_type=jnp.float32)
            acc = part if acc is None else acc + part          # (C, SB) f32

        # folded BN1 + hswish: x * relu6(x + 3) * (1/6)
        y = acc * s0_ref[...] + b0_ref[...]
        stem = y * jnp.clip(y + 3.0, 0.0, 6.0) * (1.0 / 6.0)   # (C, SB)

        # zero mask: image-border rows/cols (depthwise zero padding) + layout garbage cols
        row_g = rowid_ref[...] + (r0 - 1)                      # (1, SB) int32
        mask = jnp.where((row_g >= 0) & (row_g < Ho), colmask_ref[...], 0.0)

        # ---- Block: 1x1 expand + BN + ReLU (masked so the dw sees zero padding) ----
        u = jnp.dot(wb1_ref[...], stem, preferred_element_type=jnp.float32)
        u = jnp.maximum(u * s1_ref[...] + b1_ref[...], 0.0) * mask      # (C, SB)

        # ---- depthwise 3x3 stride 1: 9 statically lane-shifted MACs (VPU/XLU) ----
        d = None
        for kh in range(3):
            for kw in range(3):
                k = kh * 3 + kw
                off = kh * Wpx + kw
                term = wdw_ref[:, k:k + 1] * u[:, off:off + ST]
                d = term if d is None else d + term            # (C, ST)
        v = jnp.maximum(d * s2_ref[...] + b2_ref[...], 0.0)

        # ---- 1x1 project + BN + identity shortcut ----
        z = jnp.dot(wb3_ref[...], v, preferred_element_type=jnp.float32)
        z = z * s3_ref[...] + b3_ref[...] + stem[:, Wpx + 1:Wpx + 1 + ST]

        # ---- store the (TH, Wo) valid region ----
        for i in range(TH):
            o_ref[0, :, i, :] = z[:, i * Wpx:i * Wpx + Wo]

    return kernel


def _stem_forward_single(x_nchw, p):
    N, Cin, H, W = x_nchw.shape
    C = p['conv1'].shape[0]
    Ho = (H + 2 - 3) // 2 + 1
    Wo = (W + 2 - 3) // 2 + 1
    Wpx = Wo + 3                          # internal padded row width
    TH = _pick_tile_rows(Ho, Wpx)
    n_tiles = Ho // TH
    SB = (TH + 3) * Wpx
    SW = (TH + 5) * Wpx
    C4 = 4 * Cin

    # ---- space-to-depth (phase) rearrangement of the small input, bf16 ----
    # XPH[n, (ph*2+pw)*Cin + c, A, B] = x[n, c, 2*A + ph - 3, 2*B + pw - 3] (0 outside)
    pad_b = 2 * (Ho + 5) - 3 - H
    pad_r = 2 * (Wo + 3) - 3 - W
    xpad = jnp.pad(x_nchw, ((0, 0), (0, 0), (3, pad_b), (3, pad_r)))
    xph = xpad.reshape(N, Cin, Ho + 5, 2, Wo + 3, 2)
    xph = xph.transpose(0, 3, 5, 1, 2, 4).reshape(N, C4, Ho + 5, Wo + 3)
    # per-tile overlapping row windows (halo handled by recompute), flattened row-major
    xwin = jnp.stack([xph[:, :, t * TH:t * TH + TH + 5, :] for t in range(n_tiles)],
                     axis=1)
    xwin = xwin.reshape(N, n_tiles, C4, SW).astype(jnp.bfloat16)

    # ---- stem conv weights regrouped into 4 offset-group matrices (C, 4*Cin), bf16 ----
    w1 = p['conv1'].astype(jnp.float32)                        # (C, Cin, 3, 3)
    w1p = jnp.pad(w1, ((0, 0), (0, 0), (0, 1), (0, 1)))        # pad taps to 4x4
    w4 = (w1p.reshape(C, Cin, 2, 2, 2, 2)
              .transpose(2, 4, 0, 3, 5, 1)
              .reshape(4, C, C4)
              .astype(jnp.bfloat16))

    # ---- Block weights / folded BN (eval mode) ----
    s0, b0 = _fold_bn(*p['bn1'])
    s1, b1 = _fold_bn(*p['b_bn1'])
    s2, b2 = _fold_bn(*p['b_bn2'])
    s3, b3 = _fold_bn(*p['b_bn3'])
    wb1 = p['b_conv1'][:, :, 0, 0].astype(jnp.float32)         # (C, C)
    wdw = p['b_conv2'][:, 0, :, :].reshape(C, 9).astype(jnp.float32)
    wb3 = p['b_conv3'][:, :, 0, 0].astype(jnp.float32)

    # ---- precomputed mask helpers (avoid per-element div/mod in the kernel) ----
    lin = jnp.arange(SB, dtype=jnp.int32)
    col = lin % Wpx
    colmask = ((col >= 1) & (col <= Wo)).astype(jnp.float32).reshape(1, SB)
    rowid = (lin // Wpx).reshape(1, SB)

    kernel = _make_stem_block_kernel(C, Cin, TH, Wpx, Wo, Ho)

    def _const(shape):
        return pl.BlockSpec(shape, lambda n, t: (0,) * len(shape))

    out = pl.pallas_call(
        kernel,
        out_shape=jax.ShapeDtypeStruct((N, C, Ho, Wo), jnp.float32),
        grid=(N, n_tiles),
        in_specs=[
            pl.BlockSpec((1, 1, C4, SW), lambda n, t: (n, t, 0, 0)),
            _const((4, C, C4)),
            _const((C, 1)), _const((C, 1)),
            _const((C, C)), _const((C, 1)), _const((C, 1)),
            _const((C, 9)), _const((C, 1)), _const((C, 1)),
            _const((C, C)), _const((C, 1)), _const((C, 1)),
            _const((1, SB)), _const((1, SB)),
        ],
        out_specs=pl.BlockSpec((1, C, TH, Wo), lambda n, t: (n, 0, t, 0)),
        compiler_params=pltpu.CompilerParams(
            dimension_semantics=("parallel", "parallel"),
            vmem_limit_bytes=32 * 1024 * 1024,
        ),
    )(xwin, w4, s0, b0, wb1, s1, b1, wdw, s2, b2, wb3, s3, b3, colmask, rowid)
    return out


# ----------------------------------------------------------------------------
# Wrapper mirroring MobileNetV3Stem.forward (list of pathways, NCHW in/out)
# ----------------------------------------------------------------------------
def mobilenetv3_stem_forward(x_list, params_list):
    assert len(x_list) == len(params_list), "Input tensor does not contain all pathways"
    return [_stem_forward_single(x, p) for x, p in zip(x_list, params_list)]


# ----------------------------------------------------------------------------
# Deterministic parameter init (synthetic; shapes follow the PyTorch module)
# ----------------------------------------------------------------------------
def init_stem_params(key, dim_in, c):
    keys = jax.random.split(key, 8)

    def conv_w(k, shape):
        fan_in = shape[1] * shape[2] * shape[3]
        return jax.random.normal(k, shape, jnp.float32) / jnp.sqrt(float(fan_in))

    def bn_p(k, ch):
        k1, k2, k3, k4 = jax.random.split(k, 4)
        gamma = jax.random.uniform(k1, (ch,), jnp.float32, 0.5, 1.5)
        beta = 0.1 * jax.random.normal(k2, (ch,), jnp.float32)
        mean = 0.1 * jax.random.normal(k3, (ch,), jnp.float32)
        var = jax.random.uniform(k4, (ch,), jnp.float32, 0.5, 1.5)
        return (gamma, beta, mean, var)

    return {
        'conv1': conv_w(keys[0], (c, dim_in, 3, 3)),
        'bn1': bn_p(keys[1], c),
        'b_conv1': conv_w(keys[2], (c, c, 1, 1)),
        'b_bn1': bn_p(keys[3], c),
        'b_conv2': conv_w(keys[4], (c, 1, 3, 3)),   # depthwise
        'b_bn2': bn_p(keys[5], c),
        'b_conv3': conv_w(keys[6], (c, c, 1, 1)),
        'b_bn3': bn_p(keys[7], c),
    }


# ----------------------------------------------------------------------------
# Pure-JAX reference (lax.conv) for correctness check
# ----------------------------------------------------------------------------
def _ref_forward(x_nchw, p, c, bf16_stem=False):
    dn = ('NHWC', 'HWIO', 'NHWC')
    hi = jax.lax.Precision.HIGHEST

    def bn(y, params):
        g, b, m, v = params
        return (y - m) / jnp.sqrt(v + _BN_EPS) * g + b

    x = jnp.transpose(x_nchw, (0, 2, 3, 1))
    w = jnp.transpose(p['conv1'], (2, 3, 1, 0))
    if bf16_stem:   # mimic the kernel's bf16 MXU inputs on the stem conv
        x = x.astype(jnp.bfloat16).astype(jnp.float32)
        w = w.astype(jnp.bfloat16).astype(jnp.float32)
    y = jax.lax.conv_general_dilated(x, w, (2, 2), ((1, 1), (1, 1)),
                                     dimension_numbers=dn, precision=hi)
    y = bn(y, p['bn1'])
    y = y * jnp.clip(y + 3.0, 0.0, 6.0) / 6.0

    w1 = jnp.transpose(p['b_conv1'], (2, 3, 1, 0))
    t = jax.lax.conv_general_dilated(y, w1, (1, 1), ((0, 0), (0, 0)),
                                     dimension_numbers=dn, precision=hi)
    t = jnp.maximum(bn(t, p['b_bn1']), 0.0)

    wdw = jnp.transpose(p['b_conv2'], (2, 3, 1, 0))  # (3,3,1,C)
    t2 = jax.lax.conv_general_dilated(t, wdw, (1, 1), ((1, 1), (1, 1)),
                                      dimension_numbers=dn, feature_group_count=c,
                                      precision=hi)
    t2 = jnp.maximum(bn(t2, p['b_bn2']), 0.0)

    w3 = jnp.transpose(p['b_conv3'], (2, 3, 1, 0))
    z = jax.lax.conv_general_dilated(t2, w3, (1, 1), ((0, 0), (0, 0)),
                                     dimension_numbers=dn, precision=hi)
    z = bn(z, p['b_bn3']) + y
    return jnp.transpose(z, (0, 3, 1, 2))


if __name__ == "__main__":
    dim_in = [3]       # single pathway, RGB-like input
    beta_inv = [1]     # stem channels = 16 // beta_inv = 16
    N, H, W = 2, 16, 16

    key = jax.random.PRNGKey(0)
    kx, kp = jax.random.split(key)
    x_list = [jax.random.normal(kx, (N, dim_in[0], H, W), jnp.float32)]
    params_list = [init_stem_params(kp, dim_in[0], 16 // beta_inv[0])]

    out_list = mobilenetv3_stem_forward(x_list, params_list)
    out = jax.block_until_ready(out_list[0])

    c = 16 // beta_inv[0]
    assert out.shape == (N, c, H // 2, W // 2), out.shape
    assert bool(jnp.all(jnp.isfinite(out)))

    # Strict structural check: reference with the stem conv operands rounded to bf16
    # (the kernel feeds the stem matmuls in bf16 with f32 accumulation).
    ref_bf16 = _ref_forward(x_list[0], params_list[0], c, bf16_stem=True)
    err_strict = float(jnp.max(jnp.abs(out - ref_bf16)))
    assert jnp.allclose(out, ref_bf16, atol=1e-2, rtol=1e-2), err_strict

    # Loose check against the pure-f32 reference (bounds the bf16 stem rounding).
    ref_f32 = _ref_forward(x_list[0], params_list[0], c, bf16_stem=False)
    err_loose = float(jnp.max(jnp.abs(out - ref_f32)))
    assert jnp.allclose(out, ref_f32, atol=1e-1, rtol=1e-1), err_loose

    print("KERNEL_OK")
</pallas_src>

<mosaic_0001>
module attributes {stable_mosaic.version = 11 : i64} {
  func.func @kernel(%arg0: i32, %arg1: i32, %arg2: memref<1x1x12x143xbf16, #tpu.memory_space<vmem>>, %arg3: memref<4x16x12xbf16, #tpu.memory_space<vmem>>, %arg4: memref<16x1xf32, #tpu.memory_space<vmem>>, %arg5: memref<16x1xf32, #tpu.memory_space<vmem>>, %arg6: memref<16x16xf32, #tpu.memory_space<vmem>>, %arg7: memref<16x1xf32, #tpu.memory_space<vmem>>, %arg8: memref<16x1xf32, #tpu.memory_space<vmem>>, %arg9: memref<16x9xf32, #tpu.memory_space<vmem>>, %arg10: memref<16x1xf32, #tpu.memory_space<vmem>>, %arg11: memref<16x1xf32, #tpu.memory_space<vmem>>, %arg12: memref<16x16xf32, #tpu.memory_space<vmem>>, %arg13: memref<16x1xf32, #tpu.memory_space<vmem>>, %arg14: memref<16x1xf32, #tpu.memory_space<vmem>>, %arg15: memref<1x121xf32, #tpu.memory_space<vmem>>, %arg16: memref<1x121xi32, #tpu.memory_space<vmem>>, %arg17: memref<1x16x8x8xf32, #tpu.memory_space<vmem>>) attributes {dimension_semantics = [#tpu.dimension_semantics<parallel>, #tpu.dimension_semantics<parallel>], iteration_bounds = array<i64: 2, 1>, scalar_prefetch = 0 : i64, scratch_operands = 0 : i64, tpu.core_type = #tpu.core_type<tc>, window_params = [{transform_indices = @transform_0, window_bounds = array<i64: 1, 1, 12, 143>}, {pipeline_mode = #tpu.pipeline_mode<synchronous>, transform_indices = @transform_1, window_bounds = array<i64: 4, 16, 12>}, {pipeline_mode = #tpu.pipeline_mode<synchronous>, transform_indices = @transform_2, window_bounds = array<i64: 16, 1>}, {pipeline_mode = #tpu.pipeline_mode<synchronous>, transform_indices = @transform_3, window_bounds = array<i64: 16, 1>}, {pipeline_mode = #tpu.pipeline_mode<synchronous>, transform_indices = @transform_4, window_bounds = array<i64: 16, 16>}, {pipeline_mode = #tpu.pipeline_mode<synchronous>, transform_indices = @transform_5, window_bounds = array<i64: 16, 1>}, {pipeline_mode = #tpu.pipeline_mode<synchronous>, transform_indices = @transform_6, window_bounds = array<i64: 16, 1>}, {pipeline_mode = #tpu.pipeline_mode<synchronous>, transform_indices = @transform_7, window_bounds = array<i64: 16, 9>}, {pipeline_mode = #tpu.pipeline_mode<synchronous>, transform_indices = @transform_8, window_bounds = array<i64: 16, 1>}, {pipeline_mode = #tpu.pipeline_mode<synchronous>, transform_indices = @transform_9, window_bounds = array<i64: 16, 1>}, {pipeline_mode = #tpu.pipeline_mode<synchronous>, transform_indices = @transform_10, window_bounds = array<i64: 16, 16>}, {pipeline_mode = #tpu.pipeline_mode<synchronous>, transform_indices = @transform_11, window_bounds = array<i64: 16, 1>}, {pipeline_mode = #tpu.pipeline_mode<synchronous>, transform_indices = @transform_12, window_bounds = array<i64: 16, 1>}, {pipeline_mode = #tpu.pipeline_mode<synchronous>, transform_indices = @transform_13, window_bounds = array<i64: 1, 121>}, {pipeline_mode = #tpu.pipeline_mode<synchronous>, transform_indices = @transform_14, window_bounds = array<i64: 1, 121>}, {transform_indices = @transform_15, window_bounds = array<i64: 1, 16, 8, 8>}]} {
    %c8_i32 = arith.constant 8 : i32
    %0 = arith.muli %arg1, %c8_i32 : i32
    %c0 = arith.constant 0 : index
    %c0_0 = arith.constant 0 : index
    %c0_1 = arith.constant 0 : index
    %c0_2 = arith.constant 0 : index
    %1 = vector.load %arg2[%c0, %c0_0, %c0_1, %c0_2] : memref<1x1x12x143xbf16, #tpu.memory_space<vmem>>, vector<1x1x12x143xbf16>
    %2 = vector.shape_cast %1 : vector<1x1x12x143xbf16> to vector<12x143xbf16>
    %c0_3 = arith.constant 0 : index
    %c0_4 = arith.constant 0 : index
    %c0_5 = arith.constant 0 : index
    %3 = vector.load %arg3[%c0_3, %c0_4, %c0_5] : memref<4x16x12xbf16, #tpu.memory_space<vmem>>, vector<1x16x12xbf16>
    %4 = vector.shape_cast %3 : vector<1x16x12xbf16> to vector<16x12xbf16>
    %5 = vector.extract_strided_slice %2 {offsets = [0, 0], sizes = [12, 121], strides = [1, 1]} : vector<12x143xbf16> to vector<12x121xbf16>
    %cst = arith.constant dense<0.000000e+00> : vector<16x121xf32>
    %6 = tpu.matmul %4, %5, %cst {dimension_numbers = #tpu.dot_dimension_numbers<[1], [0], [0], [1], [0, 0, 1, 1], [], []>} : vector<16x12xbf16>, vector<12x121xbf16>, vector<16x121xf32> -> vector<16x121xf32>
    %c1 = arith.constant 1 : index
    %c0_6 = arith.constant 0 : index
    %c0_7 = arith.constant 0 : index
    %7 = vector.load %arg3[%c1, %c0_6, %c0_7] : memref<4x16x12xbf16, #tpu.memory_space<vmem>>, vector<1x16x12xbf16>
    %8 = vector.shape_cast %7 : vector<1x16x12xbf16> to vector<16x12xbf16>
    %9 = vector.extract_strided_slice %2 {offsets = [0, 1], sizes = [12, 121], strides = [1, 1]} : vector<12x143xbf16> to vector<12x121xbf16>
    %cst_8 = arith.constant dense<0.000000e+00> : vector<16x121xf32>
    %10 = tpu.matmul %8, %9, %cst_8 {dimension_numbers = #tpu.dot_dimension_numbers<[1], [0], [0], [1], [0, 0, 1, 1], [], []>} : vector<16x12xbf16>, vector<12x121xbf16>, vector<16x121xf32> -> vector<16x121xf32>
    %11 = arith.addf %6, %10 : vector<16x121xf32>
    %c2 = arith.constant 2 : index
    %c0_9 = arith.constant 0 : index
    %c0_10 = arith.constant 0 : index
    %12 = vector.load %arg3[%c2, %c0_9, %c0_10] : memref<4x16x12xbf16, #tpu.memory_space<vmem>>, vector<1x16x12xbf16>
    %13 = vector.shape_cast %12 : vector<1x16x12xbf16> to vector<16x12xbf16>
    %14 = vector.extract_strided_slice %2 {offsets = [0, 11], sizes = [12, 121], strides = [1, 1]} : vector<12x143xbf16> to vector<12x121xbf16>
    %cst_11 = arith.constant dense<0.000000e+00> : vector<16x121xf32>
    %15 = tpu.matmul %13, %14, %cst_11 {dimension_numbers = #tpu.dot_dimension_numbers<[1], [0], [0], [1], [0, 0, 1, 1], [], []>} : vector<16x12xbf16>, vector<12x121xbf16>, vector<16x121xf32> -> vector<16x121xf32>
    %16 = arith.addf %11, %15 : vector<16x121xf32>
    %c3 = arith.constant 3 : index
    %c0_12 = arith.constant 0 : index
    %c0_13 = arith.constant 0 : index
    %17 = vector.load %arg3[%c3, %c0_12, %c0_13] : memref<4x16x12xbf16, #tpu.memory_space<vmem>>, vector<1x16x12xbf16>
    %18 = vector.shape_cast %17 : vector<1x16x12xbf16> to vector<16x12xbf16>
    %19 = vector.extract_strided_slice %2 {offsets = [0, 12], sizes = [12, 121], strides = [1, 1]} : vector<12x143xbf16> to vector<12x121xbf16>
    %cst_14 = arith.constant dense<0.000000e+00> : vector<16x121xf32>
    %20 = tpu.matmul %18, %19, %cst_14 {dimension_numbers = #tpu.dot_dimension_numbers<[1], [0], [0], [1], [0, 0, 1, 1], [], []>} : vector<16x12xbf16>, vector<12x121xbf16>, vector<16x121xf32> -> vector<16x121xf32>
    %21 = arith.addf %16, %20 : vector<16x121xf32>
    %c0_15 = arith.constant 0 : index
    %c0_16 = arith.constant 0 : index
    %22 = vector.load %arg4[%c0_15, %c0_16] : memref<16x1xf32, #tpu.memory_space<vmem>>, vector<16x1xf32>
    %23 = vector.broadcast %22 : vector<16x1xf32> to vector<16x121xf32>
    %24 = arith.mulf %21, %23 : vector<16x121xf32>
    %c0_17 = arith.constant 0 : index
    %c0_18 = arith.constant 0 : index
    %25 = vector.load %arg5[%c0_17, %c0_18] : memref<16x1xf32, #tpu.memory_space<vmem>>, vector<16x1xf32>
    %26 = vector.broadcast %25 : vector<16x1xf32> to vector<16x121xf32>
    %27 = arith.addf %24, %26 : vector<16x121xf32>
    %cst_19 = arith.constant 3.000000e+00 : f32
    %28 = vector.broadcast %cst_19 : f32 to vector<16x121xf32>
    %29 = arith.addf %27, %28 : vector<16x121xf32>
    %cst_20 = arith.constant 0.000000e+00 : f32
    %cst_21 = arith.constant 6.000000e+00 : f32
    %30 = vector.broadcast %cst_20 : f32 to vector<16x121xf32>
    %31 = arith.maximumf %30, %29 : vector<16x121xf32>
    %32 = vector.broadcast %cst_21 : f32 to vector<16x121xf32>
    %33 = arith.minimumf %32, %31 : vector<16x121xf32>
    %34 = arith.mulf %27, %33 : vector<16x121xf32>
    %cst_22 = arith.constant 0.166666672 : f32
    %35 = vector.broadcast %cst_22 : f32 to vector<16x121xf32>
    %36 = arith.mulf %34, %35 : vector<16x121xf32>
    %c0_23 = arith.constant 0 : index
    %c0_24 = arith.constant 0 : index
    %37 = vector.load %arg16[%c0_23, %c0_24] : memref<1x121xi32, #tpu.memory_space<vmem>>, vector<1x121xi32>
    %c1_i32 = arith.constant 1 : i32
    %38 = arith.subi %0, %c1_i32 : i32
    %39 = vector.broadcast %38 : i32 to vector<1x121xi32>
    %40 = arith.addi %37, %39 : vector<1x121xi32>
    %c0_i32 = arith.constant 0 : i32
    %41 = vector.broadcast %c0_i32 : i32 to vector<1x121xi32>
    %42 = arith.cmpi sge, %40, %41 : vector<1x121xi32>
    %c8_i32_25 = arith.constant 8 : i32
    %43 = vector.broadcast %c8_i32_25 : i32 to vector<1x121xi32>
    %44 = arith.cmpi slt, %40, %43 : vector<1x121xi32>
    %45 = arith.andi %42, %44 : vector<1x121xi1>
    %c0_26 = arith.constant 0 : index
    %c0_27 = arith.constant 0 : index
    %46 = vector.load %arg15[%c0_26, %c0_27] : memref<1x121xf32, #tpu.memory_space<vmem>>, vector<1x121xf32>
    %cst_28 = arith.constant 0.000000e+00 : f32
    %47 = vector.broadcast %cst_28 : f32 to vector<1x121xf32>
    %48 = arith.select %45, %46, %47 : vector<1x121xi1>, vector<1x121xf32>
    %c0_29 = arith.constant 0 : index
    %c0_30 = arith.constant 0 : index
    %49 = vector.load %arg6[%c0_29, %c0_30] : memref<16x16xf32, #tpu.memory_space<vmem>>, vector<16x16xf32>
    %cst_31 = arith.constant dense<0.000000e+00> : vector<16x121xf32>
    %50 = tpu.matmul %49, %36, %cst_31 {dimension_numbers = #tpu.dot_dimension_numbers<[1], [0], [0], [1], [0, 0, 1, 1], [], []>} : vector<16x16xf32>, vector<16x121xf32>, vector<16x121xf32> -> vector<16x121xf32>
    %c0_32 = arith.constant 0 : index
    %c0_33 = arith.constant 0 : index
    %51 = vector.load %arg7[%c0_32, %c0_33] : memref<16x1xf32, #tpu.memory_space<vmem>>, vector<16x1xf32>
    %52 = vector.broadcast %51 : vector<16x1xf32> to vector<16x121xf32>
    %53 = arith.mulf %50, %52 : vector<16x121xf32>
    %c0_34 = arith.constant 0 : index
    %c0_35 = arith.constant 0 : index
    %54 = vector.load %arg8[%c0_34, %c0_35] : memref<16x1xf32, #tpu.memory_space<vmem>>, vector<16x1xf32>
    %55 = vector.broadcast %54 : vector<16x1xf32> to vector<16x121xf32>
    %56 = arith.addf %53, %55 : vector<16x121xf32>
    %cst_36 = arith.constant 0.000000e+00 : f32
    %57 = vector.broadcast %cst_36 : f32 to vector<16x121xf32>
    %58 = arith.maximumf %56, %57 : vector<16x121xf32>
    %59 = vector.broadcast %48 : vector<1x121xf32> to vector<16x121xf32>
    %60 = arith.mulf %58, %59 : vector<16x121xf32>
    %c0_37 = arith.constant 0 : index
    %c0_38 = arith.constant 0 : index
    %61 = vector.load %arg9[%c0_37, %c0_38] : memref<16x9xf32, #tpu.memory_space<vmem>>, vector<16x1xf32>
    %62 = vector.extract_strided_slice %60 {offsets = [0, 0], sizes = [16, 88], strides = [1, 1]} : vector<16x121xf32> to vector<16x88xf32>
    %63 = vector.broadcast %61 : vector<16x1xf32> to vector<16x88xf32>
    %64 = arith.mulf %63, %62 : vector<16x88xf32>
    %c0_39 = arith.constant 0 : index
    %c1_40 = arith.constant 1 : index
    %65 = vector.load %arg9[%c0_39, %c1_40] : memref<16x9xf32, #tpu.memory_space<vmem>>, vector<16x1xf32>
    %66 = vector.extract_strided_slice %60 {offsets = [0, 1], sizes = [16, 88], strides = [1, 1]} : vector<16x121xf32> to vector<16x88xf32>
    %67 = vector.broadcast %65 : vector<16x1xf32> to vector<16x88xf32>
    %68 = arith.mulf %67, %66 : vector<16x88xf32>
    %69 = arith.addf %64, %68 : vector<16x88xf32>
    %c0_41 = arith.constant 0 : index
    %c2_42 = arith.constant 2 : index
    %70 = vector.load %arg9[%c0_41, %c2_42] : memref<16x9xf32, #tpu.memory_space<vmem>>, vector<16x1xf32>
    %71 = vector.extract_strided_slice %60 {offsets = [0, 2], sizes = [16, 88], strides = [1, 1]} : vector<16x121xf32> to vector<16x88xf32>
    %72 = vector.broadcast %70 : vector<16x1xf32> to vector<16x88xf32>
    %73 = arith.mulf %72, %71 : vector<16x88xf32>
    %74 = arith.addf %69, %73 : vector<16x88xf32>
    %c0_43 = arith.constant 0 : index
    %c3_44 = arith.constant 3 : index
    %75 = vector.load %arg9[%c0_43, %c3_44] : memref<16x9xf32, #tpu.memory_space<vmem>>, vector<16x1xf32>
    %76 = vector.extract_strided_slice %60 {offsets = [0, 11], sizes = [16, 88], strides = [1, 1]} : vector<16x121xf32> to vector<16x88xf32>
    %77 = vector.broadcast %75 : vector<16x1xf32> to vector<16x88xf32>
    %78 = arith.mulf %77, %76 : vector<16x88xf32>
    %79 = arith.addf %74, %78 : vector<16x88xf32>
    %c0_45 = arith.constant 0 : index
    %c4 = arith.constant 4 : index
    %80 = vector.load %arg9[%c0_45, %c4] : memref<16x9xf32, #tpu.memory_space<vmem>>, vector<16x1xf32>
    %81 = vector.extract_strided_slice %60 {offsets = [0, 12], sizes = [16, 88], strides = [1, 1]} : vector<16x121xf32> to vector<16x88xf32>
    %82 = vector.broadcast %80 : vector<16x1xf32> to vector<16x88xf32>
    %83 = arith.mulf %82, %81 : vector<16x88xf32>
    %84 = arith.addf %79, %83 : vector<16x88xf32>
    %c0_46 = arith.constant 0 : index
    %c5 = arith.constant 5 : index
    %85 = vector.load %arg9[%c0_46, %c5] : memref<16x9xf32, #tpu.memory_space<vmem>>, vector<16x1xf32>
    %86 = vector.extract_strided_slice %60 {offsets = [0, 13], sizes = [16, 88], strides = [1, 1]} : vector<16x121xf32> to vector<16x88xf32>
    %87 = vector.broadcast %85 : vector<16x1xf32> to vector<16x88xf32>
    %88 = arith.mulf %87, %86 : vector<16x88xf32>
    %89 = arith.addf %84, %88 : vector<16x88xf32>
    %c0_47 = arith.constant 0 : index
    %c6 = arith.constant 6 : index
    %90 = vector.load %arg9[%c0_47, %c6] : memref<16x9xf32, #tpu.memory_space<vmem>>, vector<16x1xf32>
    %91 = vector.extract_strided_slice %60 {offsets = [0, 22], sizes = [16, 88], strides = [1, 1]} : vector<16x121xf32> to vector<16x88xf32>
    %92 = vector.broadcast %90 : vector<16x1xf32> to vector<16x88xf32>
    %93 = arith.mulf %92, %91 : vector<16x88xf32>
    %94 = arith.addf %89, %93 : vector<16x88xf32>
    %c0_48 = arith.constant 0 : index
    %c7 = arith.constant 7 : index
    %95 = vector.load %arg9[%c0_48, %c7] : memref<16x9xf32, #tpu.memory_space<vmem>>, vector<16x1xf32>
    %96 = vector.extract_strided_slice %60 {offsets = [0, 23], sizes = [16, 88], strides = [1, 1]} : vector<16x121xf32> to vector<16x88xf32>
    %97 = vector.broadcast %95 : vector<16x1xf32> to vector<16x88xf32>
    %98 = arith.mulf %97, %96 : vector<16x88xf32>
    %99 = arith.addf %94, %98 : vector<16x88xf32>
    %c0_49 = arith.constant 0 : index
    %c8 = arith.constant 8 : index
    %100 = vector.load %arg9[%c0_49, %c8] : memref<16x9xf32, #tpu.memory_space<vmem>>, vector<16x1xf32>
    %101 = vector.extract_strided_slice %60 {offsets = [0, 24], sizes = [16, 88], strides = [1, 1]} : vector<16x121xf32> to vector<16x88xf32>
    %102 = vector.broadcast %100 : vector<16x1xf32> to vector<16x88xf32>
    %103 = arith.mulf %102, %101 : vector<16x88xf32>
    %104 = arith.addf %99, %103 : vector<16x88xf32>
    %c0_50 = arith.constant 0 : index
    %c0_51 = arith.constant 0 : index
    %105 = vector.load %arg10[%c0_50, %c0_51] : memref<16x1xf32, #tpu.memory_space<vmem>>, vector<16x1xf32>
    %106 = vector.broadcast %105 : vector<16x1xf32> to vector<16x88xf32>
    %107 = arith.mulf %104, %106 : vector<16x88xf32>
    %c0_52 = arith.constant 0 : index
    %c0_53 = arith.constant 0 : index
    %108 = vector.load %arg11[%c0_52, %c0_53] : memref<16x1xf32, #tpu.memory_space<vmem>>, vector<16x1xf32>
    %109 = vector.broadcast %108 : vector<16x1xf32> to vector<16x88xf32>
    %110 = arith.addf %107, %109 : vector<16x88xf32>
    %cst_54 = arith.constant 0.000000e+00 : f32
    %111 = vector.broadcast %cst_54 : f32 to vector<16x88xf32>
    %112 = arith.maximumf %110, %111 : vector<16x88xf32>
    %c0_55 = arith.constant 0 : index
    %c0_56 = arith.constant 0 : index
    %113 = vector.load %arg12[%c0_55, %c0_56] : memref<16x16xf32, #tpu.memory_space<vmem>>, vector<16x16xf32>
    %cst_57 = arith.constant dense<0.000000e+00> : vector<16x88xf32>
    %114 = tpu.matmul %113, %112, %cst_57 {dimension_numbers = #tpu.dot_dimension_numbers<[1], [0], [0], [1], [0, 0, 1, 1], [], []>} : vector<16x16xf32>, vector<16x88xf32>, vector<16x88xf32> -> vector<16x88xf32>
    %c0_58 = arith.constant 0 : index
    %c0_59 = arith.constant 0 : index
    %115 = vector.load %arg13[%c0_58, %c0_59] : memref<16x1xf32, #tpu.memory_space<vmem>>, vector<16x1xf32>
    %116 = vector.broadcast %115 : vector<16x1xf32> to vector<16x88xf32>
    %117 = arith.mulf %114, %116 : vector<16x88xf32>
    %c0_60 = arith.constant 0 : index
    %c0_61 = arith.constant 0 : index
    %118 = vector.load %arg14[%c0_60, %c0_61] : memref<16x1xf32, #tpu.memory_space<vmem>>, vector<16x1xf32>
    %119 = vector.broadcast %118 : vector<16x1xf32> to vector<16x88xf32>
    %120 = arith.addf %117, %119 : vector<16x88xf32>
    %121 = vector.extract_strided_slice %36 {offsets = [0, 12], sizes = [16, 88], strides = [1, 1]} : vector<16x121xf32> to vector<16x88xf32>
    %122 = arith.addf %120, %121 : vector<16x88xf32>
    %123 = vector.extract_strided_slice %122 {offsets = [0, 0], sizes = [16, 8], strides = [1, 1]} : vector<16x88xf32> to vector<16x8xf32>
    %c0_62 = arith.constant 0 : index
    %c0_63 = arith.constant 0 : index
    %c0_64 = arith.constant 0 : index
    %c0_65 = arith.constant 0 : index
    %124 = vector.load %arg17[%c0_62, %c0_63, %c0_64, %c0_65] : memref<1x16x8x8xf32, #tpu.memory_space<vmem>>, vector<1x16x1x8xf32>
    %125 = vector.shape_cast %124 : vector<1x16x1x8xf32> to vector<16x8xf32>
    %126 = vector.shape_cast %123 : vector<16x8xf32> to vector<1x16x1x8xf32>
    tpu.vector_store %arg17[%c0_62, %c0_63, %c0_64, %c0_65], %126 {strides = array<i32>} : memref<1x16x8x8xf32, #tpu.memory_space<vmem>>, vector<1x16x1x8xf32>,
    %127 = vector.extract_strided_slice %122 {offsets = [0, 11], sizes = [16, 8], strides = [1, 1]} : vector<16x88xf32> to vector<16x8xf32>
    %c0_66 = arith.constant 0 : index
    %c0_67 = arith.constant 0 : index
    %c1_68 = arith.constant 1 : index
    %c0_69 = arith.constant 0 : index
    %128 = vector.load %arg17[%c0_66, %c0_67, %c1_68, %c0_69] : memref<1x16x8x8xf32, #tpu.memory_space<vmem>>, vector<1x16x1x8xf32>
    %129 = vector.shape_cast %128 : vector<1x16x1x8xf32> to vector<16x8xf32>
    %130 = vector.shape_cast %127 : vector<16x8xf32> to vector<1x16x1x8xf32>
    tpu.vector_store %arg17[%c0_66, %c0_67, %c1_68, %c0_69], %130 {strides = array<i32>} : memref<1x16x8x8xf32, #tpu.memory_space<vmem>>, vector<1x16x1x8xf32>,
    %131 = vector.extract_strided_slice %122 {offsets = [0, 22], sizes = [16, 8], strides = [1, 1]} : vector<16x88xf32> to vector<16x8xf32>
    %c0_70 = arith.constant 0 : index
    %c0_71 = arith.constant 0 : index
    %c2_72 = arith.constant 2 : index
    %c0_73 = arith.constant 0 : index
    %132 = vector.load %arg17[%c0_70, %c0_71, %c2_72, %c0_73] : memref<1x16x8x8xf32, #tpu.memory_space<vmem>>, vector<1x16x1x8xf32>
    %133 = vector.shape_cast %132 : vector<1x16x1x8xf32> to vector<16x8xf32>
    %134 = vector.shape_cast %131 : vector<16x8xf32> to vector<1x16x1x8xf32>
    tpu.vector_store %arg17[%c0_70, %c0_71, %c2_72, %c0_73], %134 {strides = array<i32>} : memref<1x16x8x8xf32, #tpu.memory_space<vmem>>, vector<1x16x1x8xf32>,
    %135 = vector.extract_strided_slice %122 {offsets = [0, 33], sizes = [16, 8], strides = [1, 1]} : vector<16x88xf32> to vector<16x8xf32>
    %c0_74 = arith.constant 0 : index
    %c0_75 = arith.constant 0 : index
    %c3_76 = arith.constant 3 : index
    %c0_77 = arith.constant 0 : index
    %136 = vector.load %arg17[%c0_74, %c0_75, %c3_76, %c0_77] : memref<1x16x8x8xf32, #tpu.memory_space<vmem>>, vector<1x16x1x8xf32>
    %137 = vector.shape_cast %136 : vector<1x16x1x8xf32> to vector<16x8xf32>
    %138 = vector.shape_cast %135 : vector<16x8xf32> to vector<1x16x1x8xf32>
    tpu.vector_store %arg17[%c0_74, %c0_75, %c3_76, %c0_77], %138 {strides = array<i32>} : memref<1x16x8x8xf32, #tpu.memory_space<vmem>>, vector<1x16x1x8xf32>,
    %139 = vector.extract_strided_slice %122 {offsets = [0, 44], sizes = [16, 8], strides = [1, 1]} : vector<16x88xf32> to vector<16x8xf32>
    %c0_78 = arith.constant 0 : index
    %c0_79 = arith.constant 0 : index
    %c4_80 = arith.constant 4 : index
    %c0_81 = arith.constant 0 : index
    %140 = vector.load %arg17[%c0_78, %c0_79, %c4_80, %c0_81] : memref<1x16x8x8xf32, #tpu.memory_space<vmem>>, vector<1x16x1x8xf32>
    %141 = vector.shape_cast %140 : vector<1x16x1x8xf32> to vector<16x8xf32>
    %142 = vector.shape_cast %139 : vector<16x8xf32> to vector<1x16x1x8xf32>
    tpu.vector_store %arg17[%c0_78, %c0_79, %c4_80, %c0_81], %142 {strides = array<i32>} : memref<1x16x8x8xf32, #tpu.memory_space<vmem>>, vector<1x16x1x8xf32>,
    %143 = vector.extract_strided_slice %122 {offsets = [0, 55], sizes = [16, 8], strides = [1, 1]} : vector<16x88xf32> to vector<16x8xf32>
    %c0_82 = arith.constant 0 : index
    %c0_83 = arith.constant 0 : index
    %c5_84 = arith.constant 5 : index
    %c0_85 = arith.constant 0 : index
    %144 = vector.load %arg17[%c0_82, %c0_83, %c5_84, %c0_85] : memref<1x16x8x8xf32, #tpu.memory_space<vmem>>, vector<1x16x1x8xf32>
    %145 = vector.shape_cast %144 : vector<1x16x1x8xf32> to vector<16x8xf32>
    %146 = vector.shape_cast %143 : vector<16x8xf32> to vector<1x16x1x8xf32>
    tpu.vector_store %arg17[%c0_82, %c0_83, %c5_84, %c0_85], %146 {strides = array<i32>} : memref<1x16x8x8xf32, #tpu.memory_space<vmem>>, vector<1x16x1x8xf32>,
    %147 = vector.extract_strided_slice %122 {offsets = [0, 66], sizes = [16, 8], strides = [1, 1]} : vector<16x88xf32> to vector<16x8xf32>
    %c0_86 = arith.constant 0 : index
    %c0_87 = arith.constant 0 : index
    %c6_88 = arith.constant 6 : index
    %c0_89 = arith.constant 0 : index
    %148 = vector.load %arg17[%c0_86, %c0_87, %c6_88, %c0_89] : memref<1x16x8x8xf32, #tpu.memory_space<vmem>>, vector<1x16x1x8xf32>
    %149 = vector.shape_cast %148 : vector<1x16x1x8xf32> to vector<16x8xf32>
    %150 = vector.shape_cast %147 : vector<16x8xf32> to vector<1x16x1x8xf32>
    tpu.vector_store %arg17[%c0_86, %c0_87, %c6_88, %c0_89], %150 {strides = array<i32>} : memref<1x16x8x8xf32, #tpu.memory_space<vmem>>, vector<1x16x1x8xf32>,
    %151 = vector.extract_strided_slice %122 {offsets = [0, 77], sizes = [16, 8], strides = [1, 1]} : vector<16x88xf32> to vector<16x8xf32>
    %c0_90 = arith.constant 0 : index
    %c0_91 = arith.constant 0 : index
    %c7_92 = arith.constant 7 : index
    %c0_93 = arith.constant 0 : index
    %152 = vector.load %arg17[%c0_90, %c0_91, %c7_92, %c0_93] : memref<1x16x8x8xf32, #tpu.memory_space<vmem>>, vector<1x16x1x8xf32>
    %153 = vector.shape_cast %152 : vector<1x16x1x8xf32> to vector<16x8xf32>
    %154 = vector.shape_cast %151 : vector<16x8xf32> to vector<1x16x1x8xf32>
    tpu.vector_store %arg17[%c0_90, %c0_91, %c7_92, %c0_93], %154 {strides = array<i32>} : memref<1x16x8x8xf32, #tpu.memory_space<vmem>>, vector<1x16x1x8xf32>,
    return
  }
  func.func @transform_0(%arg0: i32, %arg1: i32) -> (i32, i32, i32, i32) {
    %c0_i32 = arith.constant 0 : i32
    %c0_i32_0 = arith.constant 0 : i32
    %c0_i32_1 = arith.constant 0 : i32
    return %arg0, %arg1, %c0_i32, %c0_i32_0 : i32, i32, i32, i32
  }
  func.func @transform_1(%arg0: i32, %arg1: i32) -> (i32, i32, i32) {
    %c0_i32 = arith.constant 0 : i32
    %c0_i32_0 = arith.constant 0 : i32
    %c0_i32_1 = arith.constant 0 : i32
    %c0_i32_2 = arith.constant 0 : i32
    return %c0_i32, %c0_i32_0, %c0_i32_1 : i32, i32, i32
  }
  func.func @transform_2(%arg0: i32, %arg1: i32) -> (i32, i32) {
    %c0_i32 = arith.constant 0 : i32
    %c0_i32_0 = arith.constant 0 : i32
    %c0_i32_1 = arith.constant 0 : i32
    return %c0_i32, %c0_i32_0 : i32, i32
  }
  func.func @transform_3(%arg0: i32, %arg1: i32) -> (i32, i32) {
    %c0_i32 = arith.constant 0 : i32
    %c0_i32_0 = arith.constant 0 : i32
    %c0_i32_1 = arith.constant 0 : i32
    return %c0_i32, %c0_i32_0 : i32, i32
  }
  func.func @transform_4(%arg0: i32, %arg1: i32) -> (i32, i32) {
    %c0_i32 = arith.constant 0 : i32
    %c0_i32_0 = arith.constant 0 : i32
    %c0_i32_1 = arith.constant 0 : i32
    return %c0_i32, %c0_i32_0 : i32, i32
  }
  func.func @transform_5(%arg0: i32, %arg1: i32) -> (i32, i32) {
    %c0_i32 = arith.constant 0 : i32
    %c0_i32_0 = arith.constant 0 : i32
    %c0_i32_1 = arith.constant 0 : i32
    return %c0_i32, %c0_i32_0 : i32, i32
  }
  func.func @transform_6(%arg0: i32, %arg1: i32) -> (i32, i32) {
    %c0_i32 = arith.constant 0 : i32
    %c0_i32_0 = arith.constant 0 : i32
    %c0_i32_1 = arith.constant 0 : i32
    return %c0_i32, %c0_i32_0 : i32, i32
  }
  func.func @transform_7(%arg0: i32, %arg1: i32) -> (i32, i32) {
    %c0_i32 = arith.constant 0 : i32
    %c0_i32_0 = arith.constant 0 : i32
    %c0_i32_1 = arith.constant 0 : i32
    return %c0_i32, %c0_i32_0 : i32, i32
  }
  func.func @transform_8(%arg0: i32, %arg1: i32) -> (i32, i32) {
    %c0_i32 = arith.constant 0 : i32
    %c0_i32_0 = arith.constant 0 : i32
    %c0_i32_1 = arith.constant 0 : i32
    return %c0_i32, %c0_i32_0 : i32, i32
  }
  func.func @transform_9(%arg0: i32, %arg1: i32) -> (i32, i32) {
    %c0_i32 = arith.constant 0 : i32
    %c0_i32_0 = arith.constant 0 : i32
    %c0_i32_1 = arith.constant 0 : i32
    return %c0_i32, %c0_i32_0 : i32, i32
  }
  func.func @transform_10(%arg0: i32, %arg1: i32) -> (i32, i32) {
    %c0_i32 = arith.constant 0 : i32
    %c0_i32_0 = arith.constant 0 : i32
    %c0_i32_1 = arith.constant 0 : i32
    return %c0_i32, %c0_i32_0 : i32, i32
  }
  func.func @transform_11(%arg0: i32, %arg1: i32) -> (i32, i32) {
    %c0_i32 = arith.constant 0 : i32
    %c0_i32_0 = arith.constant 0 : i32
    %c0_i32_1 = arith.constant 0 : i32
    return %c0_i32, %c0_i32_0 : i32, i32
  }
  func.func @transform_12(%arg0: i32, %arg1: i32) -> (i32, i32) {
    %c0_i32 = arith.constant 0 : i32
    %c0_i32_0 = arith.constant 0 : i32
    %c0_i32_1 = arith.constant 0 : i32
    return %c0_i32, %c0_i32_0 : i32, i32
  }
  func.func @transform_13(%arg0: i32, %arg1: i32) -> (i32, i32) {
    %c0_i32 = arith.constant 0 : i32
    %c0_i32_0 = arith.constant 0 : i32
    %c0_i32_1 = arith.constant 0 : i32
    return %c0_i32, %c0_i32_0 : i32, i32
  }
  func.func @transform_14(%arg0: i32, %arg1: i32) -> (i32, i32) {
    %c0_i32 = arith.constant 0 : i32
    %c0_i32_0 = arith.constant 0 : i32
    %c0_i32_1 = arith.constant 0 : i32
    return %c0_i32, %c0_i32_0 : i32, i32
  }
  func.func @transform_15(%arg0: i32, %arg1: i32) -> (i32, i32, i32, i32) {
    %c0_i32 = arith.constant 0 : i32
    %c0_i32_0 = arith.constant 0 : i32
    %c0_i32_1 = arith.constant 0 : i32
    return %arg0, %c0_i32, %arg1, %c0_i32_0 : i32, i32, i32, i32
  }
}

</mosaic_0001>

<llo_original>
// kernel: tpu_custom_call.1
$region0: #{tpu_custom_call.1}
  #allocation0 [shape = 'u32[]', space=smem, size = 0x4, offset = 0x4, fixed_abs, tag = 'smem constant byte address 0x4 - core index']
  #allocation1 [shape = 'u32[144,128]{1,0:T(1,128)}', space=vmem, size = 0x12000, scoped, tag = 'internal scratch']
  %s0 = inlined_call_operand.vmem [shape: bf16[2,1,12,143], index: 0, kind: input, shape index: {}]
  %s1 = inlined_call_operand.vmem [shape: bf16[4,16,12], index: 1, kind: input, shape index: {}]
  %s2 = inlined_call_operand.vmem [shape: f32[16,1], index: 2, kind: input, shape index: {}]
  %s3 = inlined_call_operand.vmem [shape: f32[16,1], index: 3, kind: input, shape index: {}]
  %s4 = inlined_call_operand.vmem [shape: f32[16,16], index: 4, kind: input, shape index: {}]
  %s5 = inlined_call_operand.vmem [shape: f32[16,1], index: 5, kind: input, shape index: {}]
  %s6 = inlined_call_operand.vmem [shape: f32[16,1], index: 6, kind: input, shape index: {}]
  %s7 = inlined_call_operand.vmem [shape: f32[16,9], index: 7, kind: input, shape index: {}]
  %s8 = inlined_call_operand.vmem [shape: f32[16,1], index: 8, kind: input, shape index: {}]
  %s9 = inlined_call_operand.vmem [shape: f32[16,1], index: 9, kind: input, shape index: {}]
  %s10 = inlined_call_operand.vmem [shape: f32[16,16], index: 10, kind: input, shape index: {}]
  %s11 = inlined_call_operand.vmem [shape: f32[16,1], index: 11, kind: input, shape index: {}]
  %s12 = inlined_call_operand.vmem [shape: f32[16,1], index: 12, kind: input, shape index: {}]
  %s13 = inlined_call_operand.vmem [shape: f32[1,121], index: 13, kind: input, shape index: {}]
  %s14 = inlined_call_operand.vmem [shape: s32[1,121], index: 14, kind: input, shape index: {}]
  %s15 = inlined_call_operand.vmem [shape: f32[2,16,8,8], index: 15, kind: output, shape index: {}]
  %s16 = sld [smem:[#allocation0]]
  $region93: #{tpu_custom_call.1} parent=0
    _
  %s18 = ssub.s32 1, %s16
  %s19 = scalar_select 0, %s18, %s16
  loop: start=0, step=1, limit=4
  $region2: #{tpu_custom_call.1} parent=0 // loop_pre_header
    _
  $region3: #{tpu_custom_call.1} parent=0 // loop_header
    %s21 = sphi 0, %s25
    %p22 = scmp.ge.s32.totalorder %s21, 4
    %s28 = sphi 0, %s40
    %s29 = sphi 0, %s36
    %s30 = sphi 0, %s28
    %s31 = sphi 0, %s29
    %s32 = sphi 0, %s30
    %s33 = sphi 0, %s31
    %s45 = sphi 0, %s47
    %s48 = sphi 0, %s45
    %s49 = sphi 0, %s48
    %s65 = sphi 0, %s49
    %s69 = sphi 0, %s69
    %s71 = sphi 0, %s69
    %s72 = sphi 0, %s71
    %s86 = sphi 0, %s72
    %s90 = sphi 0, %s90
    %s92 = sphi 0, %s90
    %s93 = sphi 0, %s92
    %s107 = sphi 0, %s93
    %s111 = sphi 0, %s111
    %s113 = sphi 0, %s111
    %s114 = sphi 0, %s113
    %s128 = sphi 0, %s114
    %s132 = sphi 0, %s132
    %s134 = sphi 0, %s132
    %s135 = sphi 0, %s134
    %s149 = sphi 0, %s135
    %s153 = sphi 0, %s153
    %s155 = sphi 0, %s153
    %s156 = sphi 0, %s155
    %s170 = sphi 0, %s156
    %s174 = sphi 0, %s174
    %s176 = sphi 0, %s174
    %s177 = sphi 0, %s176
    %s191 = sphi 0, %s177
    %s195 = sphi 0, %s195
    %s197 = sphi 0, %s195
    %s198 = sphi 0, %s197
    %s212 = sphi 0, %s198
    %s216 = sphi 0, %s216
    %s218 = sphi 0, %s216
    %s219 = sphi 0, %s218
    %s233 = sphi 0, %s219
    %s237 = sphi 0, %s237
    %s239 = sphi 0, %s237
    %s240 = sphi 0, %s239
    %s254 = sphi 0, %s240
    %s258 = sphi 0, %s258
    %s260 = sphi 0, %s258
    %s261 = sphi 0, %s260
    %s275 = sphi 0, %s261
    %s279 = sphi 0, %s279
    %s281 = sphi 0, %s279
    %s282 = sphi 0, %s281
    %s296 = sphi 0, %s282
    %s300 = sphi 0, %s300
    %s302 = sphi 0, %s300
    %s303 = sphi 0, %s302
    %s317 = sphi 0, %s303
    %s321 = sphi 0, %s321
    %s323 = sphi 0, %s321
    %s324 = sphi 0, %s323
    %s338 = sphi 0, %s324
    %s342 = sphi 0, %s342
    %s344 = sphi 0, %s342
    %s345 = sphi 0, %s344
    %s359 = sphi 0, %s345
    %s367 = sphi 0, %s369
    %s370 = sphi 0, %s367
    %s371 = sphi 0, %s370
    %s387 = sphi 0, %s371
  $region4: #{tpu_custom_call.1} parent=0 // loop_header_branch
    %24 = sbr.rel (%p22) target = $region8
  $region5: #{tpu_custom_call.1} parent=0 // loop_body
    %s26 = ssub.s32 %s21, 1
    %s27 = ssub.s32 %s21, 2
    %s34 = sadd.s32 1, %s29
    %p35 = scmp.ge.s32.totalorder %s34, 1
    %s36 = scalar_select %p35, 0, %s34
    %s37 = sadd.s32 1, %s28
    %s38 = scalar_select %p35, %s37, %s28
    %p39 = scmp.ge.s32.totalorder %s38, 2
    %s40 = scalar_select %p39, 0, %s38
    %s41 = ssub.s32 %s28, %s40
    %s42 = ssub.s32 %s29, %s36
    %s43 = sor.u32 %s41, %s42
    %p44 = scmp.eq.s32.totalorder %s43, 0
    %s46 = sadd.s32 %s45, 1
    %s47 = scalar_select %p44, %s45, %s46
    %p50 = pneg %p44
    %p51 = scmp.eq.s32.totalorder %s21, 1
    %p52 = por %p50, %p51
    %p53 = scmp.ne.s32.totalorder %s45, %s48
    %p54 = scmp.eq.s32.totalorder %s21, 0
    %p55 = por %p53, %p54
    %p56 = scmp.ne.s32.totalorder %s45, %s48
    %p57 = scmp.eq.s32.totalorder %s26, 1
    %p58 = por %p56, %p57
    %p59 = scmp.ne.s32.totalorder %s48, %s49
    %p60 = scmp.eq.s32.totalorder %s26, 0
    %p61 = por %p59, %p60
    %p62 = scmp.ne.s32.totalorder %s48, %s49
    %p63 = scmp.eq.s32.totalorder %s27, 1
    %p64 = por %p62, %p63
    %p66 = scmp.ne.s32.totalorder %s49, %s65
    %p67 = scmp.eq.s32.totalorder %s27, 0
    %p68 = por %p66, %p67
    %s70 = sadd.s32 %s69, 1
    %p73 = scmp.eq.s32.totalorder %s21, 1
    %p74 = scmp.ne.s32.totalorder %s69, %s71
    %p75 = scmp.eq.s32.totalorder %s21, 0
    %p76 = por %p74, %p75
    %p77 = scmp.ne.s32.totalorder %s69, %s71
    %p78 = scmp.eq.s32.totalorder %s26, 1
    %p79 = por %p77, %p78
    %p80 = scmp.ne.s32.totalorder %s71, %s72
    %p81 = scmp.eq.s32.totalorder %s26, 0
    %p82 = por %p80, %p81
    %p83 = scmp.ne.s32.totalorder %s71, %s72
    %p84 = scmp.eq.s32.totalorder %s27, 1
    %p85 = por %p83, %p84
    %p87 = scmp.ne.s32.totalorder %s72, %s86
    %p88 = scmp.eq.s32.totalorder %s27, 0
    %p89 = por %p87, %p88
    %s91 = sadd.s32 %s90, 1
    %p94 = scmp.eq.s32.totalorder %s21, 1
    %p95 = scmp.ne.s32.totalorder %s90, %s92
    %p96 = scmp.eq.s32.totalorder %s21, 0
    %p97 = por %p95, %p96
    %p98 = scmp.ne.s32.totalorder %s90, %s92
    %p99 = scmp.eq.s32.totalorder %s26, 1
    %p100 = por %p98, %p99
    %p101 = scmp.ne.s32.totalorder %s92, %s93
    %p102 = scmp.eq.s32.totalorder %s26, 0
    %p103 = por %p101, %p102
    %p104 = scmp.ne.s32.totalorder %s92, %s93
    %p105 = scmp.eq.s32.totalorder %s27, 1
    %p106 = por %p104, %p105
    %p108 = scmp.ne.s32.totalorder %s93, %s107
    %p109 = scmp.eq.s32.totalorder %s27, 0
    %p110 = por %p108, %p109
    %s112 = sadd.s32 %s111, 1
    %p115 = scmp.eq.s32.totalorder %s21, 1
    %p116 = scmp.ne.s32.totalorder %s111, %s113
    %p117 = scmp.eq.s32.totalorder %s21, 0
    %p118 = por %p116, %p117
    %p119 = scmp.ne.s32.totalorder %s111, %s113
    %p120 = scmp.eq.s32.totalorder %s26, 1
    %p121 = por %p119, %p120
    %p122 = scmp.ne.s32.totalorder %s113, %s114
    %p123 = scmp.eq.s32.totalorder %s26, 0
    %p124 = por %p122, %p123
    %p125 = scmp.ne.s32.totalorder %s113, %s114
    %p126 = scmp.eq.s32.totalorder %s27, 1
    %p127 = por %p125, %p126
    %p129 = scmp.ne.s32.totalorder %s114, %s128
    %p130 = scmp.eq.s32.totalorder %s27, 0
    %p131 = por %p129, %p130
    %s133 = sadd.s32 %s132, 1
    %p136 = scmp.eq.s32.totalorder %s21, 1
    %p137 = scmp.ne.s32.totalorder %s132, %s134
    %p138 = scmp.eq.s32.totalorder %s21, 0
    %p139 = por %p137, %p138
    %p140 = scmp.ne.s32.totalorder %s132, %s134
    %p141 = scmp.eq.s32.totalorder %s26, 1
    %p142 = por %p140, %p141
    %p143 = scmp.ne.s32.totalorder %s134, %s135
    %p144 = scmp.eq.s32.totalorder %s26, 0
    %p145 = por %p143, %p144
    %p146 = scmp.ne.s32.totalorder %s134, %s135
    %p147 = scmp.eq.s32.totalorder %s27, 1
    %p148 = por %p146, %p147
    %p150 = scmp.ne.s32.totalorder %s135, %s149
    %p151 = scmp.eq.s32.totalorder %s27, 0
    %p152 = por %p150, %p151
    %s154 = sadd.s32 %s153, 1
    %p157 = scmp.eq.s32.totalorder %s21, 1
    %p158 = scmp.ne.s32.totalorder %s153, %s155
    %p159 = scmp.eq.s32.totalorder %s21, 0
    %p160 = por %p158, %p159
    %p161 = scmp.ne.s32.totalorder %s153, %s155
    %p162 = scmp.eq.s32.totalorder %s26, 1
    %p163 = por %p161, %p162
    %p164 = scmp.ne.s32.totalorder %s155, %s156
    %p165 = scmp.eq.s32.totalorder %s26, 0
    %p166 = por %p164, %p165
    %p167 = scmp.ne.s32.totalorder %s155, %s156
    %p168 = scmp.eq.s32.totalorder %s27, 1
    %p169 = por %p167, %p168
    %p171 = scmp.ne.s32.totalorder %s156, %s170
    %p172 = scmp.eq.s32.totalorder %s27, 0
    %p173 = por %p171, %p172
    %s175 = sadd.s32 %s174, 1
    %p178 = scmp.eq.s32.totalorder %s21, 1
    %p179 = scmp.ne.s32.totalorder %s174, %s176
    %p180 = scmp.eq.s32.totalorder %s21, 0
    %p181 = por %p179, %p180
    %p182 = scmp.ne.s32.totalorder %s174, %s176
    %p183 = scmp.eq.s32.totalorder %s26, 1
    %p184 = por %p182, %p183
    %p185 = scmp.ne.s32.totalorder %s176, %s177
    %p186 = scmp.eq.s32.totalorder %s26, 0
    %p187 = por %p185, %p186
    %p188 = scmp.ne.s32.totalorder %s176, %s177
    %p189 = scmp.eq.s32.totalorder %s27, 1
    %p190 = por %p188, %p189
    %p192 = scmp.ne.s32.totalorder %s177, %s191
    %p193 = scmp.eq.s32.totalorder %s27, 0
    %p194 = por %p192, %p193
    %s196 = sadd.s32 %s195, 1
    %p199 = scmp.eq.s32.totalorder %s21, 1
    %p200 = scmp.ne.s32.totalorder %s195, %s197
    %p201 = scmp.eq.s32.totalorder %s21, 0
    %p202 = por %p200, %p201
    %p203 = scmp.ne.s32.totalorder %s195, %s197
    %p204 = scmp.eq.s32.totalorder %s26, 1
    %p205 = por %p203, %p204
    %p206 = scmp.ne.s32.totalorder %s197, %s198
    %p207 = scmp.eq.s32.totalorder %s26, 0
    %p208 = por %p206, %p207
    %p209 = scmp.ne.s32.totalorder %s197, %s198
    %p210 = scmp.eq.s32.totalorder %s27, 1
    %p211 = por %p209, %p210
    %p213 = scmp.ne.s32.totalorder %s198, %s212
    %p214 = scmp.eq.s32.totalorder %s27, 0
    %p215 = por %p213, %p214
    %s217 = sadd.s32 %s216, 1
    %p220 = scmp.eq.s32.totalorder %s21, 1
    %p221 = scmp.ne.s32.totalorder %s216, %s218
    %p222 = scmp.eq.s32.totalorder %s21, 0
    %p223 = por %p221, %p222
    %p224 = scmp.ne.s32.totalorder %s216, %s218
    %p225 = scmp.eq.s32.totalorder %s26, 1
    %p226 = por %p224, %p225
    %p227 = scmp.ne.s32.totalorder %s218, %s219
    %p228 = scmp.eq.s32.totalorder %s26, 0
    %p229 = por %p227, %p228
    %p230 = scmp.ne.s32.totalorder %s218, %s219
    %p231 = scmp.eq.s32.totalorder %s27, 1
    %p232 = por %p230, %p231
    %p234 = scmp.ne.s32.totalorder %s219, %s233
    %p235 = scmp.eq.s32.totalorder %s27, 0
    %p236 = por %p234, %p235
    %s238 = sadd.s32 %s237, 1
    %p241 = scmp.eq.s32.totalorder %s21, 1
    %p242 = scmp.ne.s32.totalorder %s237, %s239
    %p243 = scmp.eq.s32.totalorder %s21, 0
    %p244 = por %p242, %p243
    %p245 = scmp.ne.s32.totalorder %s237, %s239
    %p246 = scmp.eq.s32.totalorder %s26, 1
    %p247 = por %p245, %p246
    %p248 = scmp.ne.s32.totalorder %s239, %s240
    %p249 = scmp.eq.s32.totalorder %s26, 0
    %p250 = por %p248, %p249
    %p251 = scmp.ne.s32.totalorder %s239, %s240
    %p252 = scmp.eq.s32.totalorder %s27, 1
    %p253 = por %p251, %p252
    %p255 = scmp.ne.s32.totalorder %s240, %s254
    %p256 = scmp.eq.s32.totalorder %s27, 0
    %p257 = por %p255, %p256
    %s259 = sadd.s32 %s258, 1
    %p262 = scmp.eq.s32.totalorder %s21, 1
    %p263 = scmp.ne.s32.totalorder %s258, %s260
    %p264 = scmp.eq.s32.totalorder %s21, 0
    %p265 = por %p263, %p264
    %p266 = scmp.ne.s32.totalorder %s258, %s260
    %p267 = scmp.eq.s32.totalorder %s26, 1
    %p268 = por %p266, %p267
    %p269 = scmp.ne.s32.totalorder %s260, %s261
    %p270 = scmp.eq.s32.totalorder %s26, 0
    %p271 = por %p269, %p270
    %p272 = scmp.ne.s32.totalorder %s260, %s261
    %p273 = scmp.eq.s32.totalorder %s27, 1
    %p274 = por %p272, %p273
    %p276 = scmp.ne.s32.totalorder %s261, %s275
    %p277 = scmp.eq.s32.totalorder %s27, 0
    %p278 = por %p276, %p277
    %s280 = sadd.s32 %s279, 1
    %p283 = scmp.eq.s32.totalorder %s21, 1
    %p284 = scmp.ne.s32.totalorder %s279, %s281
    %p285 = scmp.eq.s32.totalorder %s21, 0
    %p286 = por %p284, %p285
    %p287 = scmp.ne.s32.totalorder %s279, %s281
    %p288 = scmp.eq.s32.totalorder %s26, 1
    %p289 = por %p287, %p288
    %p290 = scmp.ne.s32.totalorder %s281, %s282
    %p291 = scmp.eq.s32.totalorder %s26, 0
    %p292 = por %p290, %p291
    %p293 = scmp.ne.s32.totalorder %s281, %s282
    %p294 = scmp.eq.s32.totalorder %s27, 1
    %p295 = por %p293, %p294
    %p297 = scmp.ne.s32.totalorder %s282, %s296
    %p298 = scmp.eq.s32.totalorder %s27, 0
    %p299 = por %p297, %p298
    %s301 = sadd.s32 %s300, 1
    %p304 = scmp.eq.s32.totalorder %s21, 1
    %p305 = scmp.ne.s32.totalorder %s300, %s302
    %p306 = scmp.eq.s32.totalorder %s21, 0
    %p307 = por %p305, %p306
    %p308 = scmp.ne.s32.totalorder %s300, %s302
    %p309 = scmp.eq.s32.totalorder %s26, 1
    %p310 = por %p308, %p309
    %p311 = scmp.ne.s32.totalorder %s302, %s303
    %p312 = scmp.eq.s32.totalorder %s26, 0
    %p313 = por %p311, %p312
    %p314 = scmp.ne.s32.totalorder %s302, %s303
    %p315 = scmp.eq.s32.totalorder %s27, 1
    %p316 = por %p314, %p315
    %p318 = scmp.ne.s32.totalorder %s303, %s317
    %p319 = scmp.eq.s32.totalorder %s27, 0
    %p320 = por %p318, %p319
    %s322 = sadd.s32 %s321, 1
    %p325 = scmp.eq.s32.totalorder %s21, 1
    %p326 = scmp.ne.s32.totalorder %s321, %s323
    %p327 = scmp.eq.s32.totalorder %s21, 0
    %p328 = por %p326, %p327
    %p329 = scmp.ne.s32.totalorder %s321, %s323
    %p330 = scmp.eq.s32.totalorder %s26, 1
    %p331 = por %p329, %p330
    %p332 = scmp.ne.s32.totalorder %s323, %s324
    %p333 = scmp.eq.s32.totalorder %s26, 0
    %p334 = por %p332, %p333
    %p335 = scmp.ne.s32.totalorder %s323, %s324
    %p336 = scmp.eq.s32.totalorder %s27, 1
    %p337 = por %p335, %p336
    %p339 = scmp.ne.s32.totalorder %s324, %s338
    %p340 = scmp.eq.s32.totalorder %s27, 0
    %p341 = por %p339, %p340
    %s343 = sadd.s32 %s342, 1
    %p346 = scmp.eq.s32.totalorder %s21, 1
    %p347 = scmp.ne.s32.totalorder %s342, %s344
    %p348 = scmp.eq.s32.totalorder %s21, 0
    %p349 = por %p347, %p348
    %p350 = scmp.ne.s32.totalorder %s342, %s344
    %p351 = scmp.eq.s32.totalorder %s26, 1
    %p352 = por %p350, %p351
    %p353 = scmp.ne.s32.totalorder %s344, %s345
    %p354 = scmp.eq.s32.totalorder %s26, 0
    %p355 = por %p353, %p354
    %p356 = scmp.ne.s32.totalorder %s344, %s345
    %p357 = scmp.eq.s32.totalorder %s27, 1
    %p358 = por %p356, %p357
    %p360 = scmp.ne.s32.totalorder %s345, %s359
    %p361 = scmp.eq.s32.totalorder %s27, 0
    %p362 = por %p360, %p361
    %s363 = ssub.s32 %s28, %s40
    %s364 = ssub.s32 %s29, %s36
    %s365 = sor.u32 %s363, %s364
    %p366 = scmp.eq.s32.totalorder %s365, 0
    %s368 = sadd.s32 %s367, 1
    %s369 = scalar_select %p366, %s367, %s368
    %p372 = pneg %p366
    %p373 = scmp.eq.s32.totalorder %s21, 1
    %p374 = por %p372, %p373
    %p375 = scmp.ne.s32.totalorder %s367, %s370
    %p376 = scmp.eq.s32.totalorder %s21, 0
    %p377 = por %p375, %p376
    %p378 = scmp.ne.s32.totalorder %s367, %s370
    %p379 = scmp.eq.s32.totalorder %s26, 1
    %p380 = por %p378, %p379
    %p381 = scmp.ne.s32.totalorder %s370, %s371
    %p382 = scmp.eq.s32.totalorder %s26, 0
    %p383 = por %p381, %p382
    %p384 = scmp.ne.s32.totalorder %s370, %s371
    %p385 = scmp.eq.s32.totalorder %s27, 1
    %p386 = por %p384, %p385
    %p388 = scmp.ne.s32.totalorder %s371, %s387
    %p389 = scmp.eq.s32.totalorder %s27, 0
    %p390 = por %p388, %p389
    %p391 = scmp.le.s32.totalorder 1, %s21
    %p392 = scmp.lt.s32.totalorder %s21, 3
    %p393 = pnand %p391, %p392
    %p394 = pneg %p393
    // Predicated region
    $region9: #{tpu_custom_call.1} parent=5 // pred_check
      _
    $region10: #{tpu_custom_call.1} parent=5 // pred_check_branch
      %396 = sbr.rel (%p393) target = $region12
    $region11: #{tpu_custom_call.1} parent=5 // pred_region
      %s397 = ssub.s32 %s21, 1
      // Predicated region
      $region13: #{tpu_custom_call.1} parent=11 // pred_check
        %p398 = pneg %p82
      $region14: #{tpu_custom_call.1} parent=11 // pred_check_branch
        %400 = sbr.rel (%p398) target = $region16
      $region15: #{tpu_custom_call.1} parent=11 // pred_region
        _
      $region16: #{tpu_custom_call.1} parent=11 // pred_fallthru
        _
      // Predicated region
      $region17: #{tpu_custom_call.1} parent=11 // pred_check
        %p401 = pneg %p103
      $region18: #{tpu_custom_call.1} parent=11 // pred_check_branch
        %403 = sbr.rel (%p401) target = $region20
      $region19: #{tpu_custom_call.1} parent=11 // pred_region
        _
      $region20: #{tpu_custom_call.1} parent=11 // pred_fallthru
        _
      // Predicated region
      $region21: #{tpu_custom_call.1} parent=11 // pred_check
        %p404 = pneg %p124
      $region22: #{tpu_custom_call.1} parent=11 // pred_check_branch
        %406 = sbr.rel (%p404) target = $region24
      $region23: #{tpu_custom_call.1} parent=11 // pred_region
        _
      $region24: #{tpu_custom_call.1} parent=11 // pred_fallthru
        _
      // Predicated region
      $region25: #{tpu_custom_call.1} parent=11 // pred_check
        %p407 = pneg %p145
      $region26: #{tpu_custom_call.1} parent=11 // pred_check_branch
        %409 = sbr.rel (%p407) target = $region28
      $region27: #{tpu_custom_call.1} parent=11 // pred_region
        _
      $region28: #{tpu_custom_call.1} parent=11 // pred_fallthru
        _
      // Predicated region
      $region29: #{tpu_custom_call.1} parent=11 // pred_check
        %p410 = pneg %p166
      $region30: #{tpu_custom_call.1} parent=11 // pred_check_branch
        %412 = sbr.rel (%p410) target = $region32
      $region31: #{tpu_custom_call.1} parent=11 // pred_region
        _
      $region32: #{tpu_custom_call.1} parent=11 // pred_fallthru
        _
      // Predicated region
      $region33: #{tpu_custom_call.1} parent=11 // pred_check
        %p413 = pneg %p187
      $region34: #{tpu_custom_call.1} parent=11 // pred_check_branch
        %415 = sbr.rel (%p413) target = $region36
      $region35: #{tpu_custom_call.1} parent=11 // pred_region
        _
      $region36: #{tpu_custom_call.1} parent=11 // pred_fallthru
        _
      // Predicated region
      $region37: #{tpu_custom_call.1} parent=11 // pred_check
        %p416 = pneg %p208
      $region38: #{tpu_custom_call.1} parent=11 // pred_check_branch
        %418 = sbr.rel (%p416) target = $region40
      $region39: #{tpu_custom_call.1} parent=11 // pred_region
        _
      $region40: #{tpu_custom_call.1} parent=11 // pred_fallthru
        _
      // Predicated region
      $region41: #{tpu_custom_call.1} parent=11 // pred_check
        %p419 = pneg %p229
      $region42: #{tpu_custom_call.1} parent=11 // pred_check_branch
        %421 = sbr.rel (%p419) target = $region44
      $region43: #{tpu_custom_call.1} parent=11 // pred_region
        _
      $region44: #{tpu_custom_call.1} parent=11 // pred_fallthru
        _
      // Predicated region
      $region45: #{tpu_custom_call.1} parent=11 // pred_check
        %p422 = pneg %p250
      $region46: #{tpu_custom_call.1} parent=11 // pred_check_branch
        %424 = sbr.rel (%p422) target = $region48
      $region47: #{tpu_custom_call.1} parent=11 // pred_region
        _
      $region48: #{tpu_custom_call.1} parent=11 // pred_fallthru
        _
      // Predicated region
      $region49: #{tpu_custom_call.1} parent=11 // pred_check
        %p425 = pneg %p271
      $region50: #{tpu_custom_call.1} parent=11 // pred_check_branch
        %427 = sbr.rel (%p425) target = $region52
      $region51: #{tpu_custom_call.1} parent=11 // pred_region
        _
      $region52: #{tpu_custom_call.1} parent=11 // pred_fallthru
        _
      // Predicated region
      $region53: #{tpu_custom_call.1} parent=11 // pred_check
        %p428 = pneg %p292
      $region54: #{tpu_custom_call.1} parent=11 // pred_check_branch
        %430 = sbr.rel (%p428) target = $region56
      $region55: #{tpu_custom_call.1} parent=11 // pred_region
        _
      $region56: #{tpu_custom_call.1} parent=11 // pred_fallthru
        _
      // Predicated region
      $region57: #{tpu_custom_call.1} parent=11 // pred_check
        %p431 = pneg %p313
      $region58: #{tpu_custom_call.1} parent=11 // pred_check_branch
        %433 = sbr.rel (%p431) target = $region60
      $region59: #{tpu_custom_call.1} parent=11 // pred_region
        _
      $region60: #{tpu_custom_call.1} parent=11 // pred_fallthru
        _
      // Predicated region
      $region61: #{tpu_custom_call.1} parent=11 // pred_check
        %p434 = pneg %p334
      $region62: #{tpu_custom_call.1} parent=11 // pred_check_branch
        %436 = sbr.rel (%p434) target = $region64
      $region63: #{tpu_custom_call.1} parent=11 // pred_region
        _
      $region64: #{tpu_custom_call.1} parent=11 // pred_fallthru
        _
      // Predicated region
      $region65: #{tpu_custom_call.1} parent=11 // pred_check
        %p437 = pneg %p355
      $region66: #{tpu_custom_call.1} parent=11 // pred_check_branch
        %439 = sbr.rel (%p437) target = $region68
      $region67: #{tpu_custom_call.1} parent=11 // pred_region
        _
      $region68: #{tpu_custom_call.1} parent=11 // pred_fallthru
        _
    $region12: #{tpu_custom_call.1} parent=5 // pred_fallthru
      _
    %p440 = scmp.lt.s32.totalorder %s21, 2
    // Predicated region
    $region69: #{tpu_custom_call.1} parent=5 // pred_check
      %p441 = pneg %p440
    $region70: #{tpu_custom_call.1} parent=5 // pred_check_branch
      %443 = sbr.rel (%p441) target = $region72
    $region71: #{tpu_custom_call.1} parent=5 // pred_region
      // Predicated region
      $region73: #{tpu_custom_call.1} parent=71 // pred_check
        %p444 = pneg %p55
      $region74: #{tpu_custom_call.1} parent=71 // pred_check_branch
        %446 = sbr.rel (%p444) target = $region76
      $region75: #{tpu_custom_call.1} parent=71 // pred_region
        %p447 = scmp.lt.s32.totalorder %s28, 1
        %s448 = scalar_select %p447, %s28, 1
        %p449 = scmp.lt.s32.totalorder %s29, 0
        %s450 = scalar_select %p449, %s29, 0
        %s451 = smul.addr %s450, 4
        %s452 = smul.addr %s448, 4
        %s453 = sadd.s32 %s451, %s452
        %s454 = smul.addr %s453, 4
        %s455 = scalar_lea.vmem %s0, %s454
      $region76: #{tpu_custom_call.1} parent=71 // pred_fallthru
        _
    $region72: #{tpu_custom_call.1} parent=5 // pred_fallthru
      _
    %p456 = scmp.le.s32.totalorder 1, %s21
    %p457 = scmp.lt.s32.totalorder %s21, 3
    %p458 = pnand %p456, %p457
    %p459 = pneg %p458
    // Predicated region
    $region77: #{tpu_custom_call.1} parent=5 // pred_check
      _
    $region78: #{tpu_custom_call.1} parent=5 // pred_check_branch
      %461 = sbr.rel (%p458) target = $region80
    $region79: #{tpu_custom_call.1} parent=5 // pred_region
      %s462 = ssub.s32 %s21, 1
      %p463 = scmp.lt.s32.totalorder %s30, 1
      %s464 = scalar_select %p463, %s30, 1
      %p465 = scmp.lt.s32.totalorder %s31, 0
      %s466 = scalar_select %p465, %s31, 0
      %s467 = smul.addr %s466, 4
      %s468 = smul.addr %s464, 4
      %s469 = sadd.s32 %s467, %s468
      %s470 = smul.addr %s469, 4
      %s471 = scalar_lea.vmem %s0, %s470
      %p472 = pneg %p61
      %p473 = pneg %p58
      %p474 = pneg %p82
      %p475 = pneg %p79
      %p476 = pneg %p103
      %p477 = pneg %p100
      %p478 = pneg %p124
      %p479 = pneg %p121
      %p480 = pneg %p145
      %p481 = pneg %p142
      %p482 = pneg %p166
      %p483 = pneg %p163
      %p484 = pneg %p187
      %p485 = pneg %p184
      %p486 = pneg %p208
      %p487 = pneg %p205
      %p488 = pneg %p229
      %p489 = pneg %p226
      %p490 = pneg %p250
      %p491 = pneg %p247
      %p492 = pneg %p271
      %p493 = pneg %p268
      %p494 = pneg %p292
      %p495 = pneg %p289
      %p496 = pneg %p313
      %p497 = pneg %p310
      %p498 = pneg %p334
      %p499 = pneg %p331
      %p500 = pneg %p355
      %p501 = pneg %p352
      %p502 = pneg %p383
      %p503 = pneg %p380
      %p504 = scmp.lt.s32.totalorder %s30, 1
      %s505 = scalar_select %p504, %s30, 1
      %p506 = scmp.lt.s32.totalorder %s31, 0
      %s507 = scalar_select %p506, %s31, 0
      %s508 = smul.addr %s505, 16
      %s509 = sadd.s32 %s507, %s508
      %s510 = smul.addr %s509, 8
      %s511 = scalar_lea.vmem %s15, %s510
      %p512 = scmp.lt.s32.totalorder %s30, 1
      %s513 = scalar_select %p512, %s30, 1
      %p514 = scmp.lt.s32.totalorder %s31, 0
      %s515 = scalar_select %p514, %s31, 0
      %s516 = smul.addr %s515, 4
      %s517 = smul.addr %s513, 4
      %s518 = sadd.s32 %s516, %s517
      %s519 = smul.addr %s518, 4
      %s520 = scalar_lea.vmem %s0, %s519
      %p521 = scmp.lt.s32.totalorder %s30, 1
      %s522 = scalar_select %p521, %s30, 1
      %p523 = scmp.lt.s32.totalorder %s31, 0
      %s524 = scalar_select %p523, %s31, 0
      %s525 = smul.addr %s522, 16
      %s526 = sadd.s32 %s524, %s525
      %s527 = smul.addr %s526, 8
      %s528 = scalar_lea.vmem %s15, %s527
      %s530 = smul.u32 %s31, 8
      %v531 = vld [vmem:[%s520] sm:$0xff]
      %v532 = vld [vmem:[%s520 + $0x8] sm:$0x33]
      %v533 = vld [vmem:[%s1] sm:$0xf]
      %v534 = vld [vmem:[%s1 + $0x4] sm:$0xf]
      %s535 = scalar_lea.vmem %s1, 8
      %v536 = vld [vmem:[%s535] sm:$0xf]
      %v537 = vld [vmem:[%s535 + $0x4] sm:$0xf]
      %v540 = vunpack.c.l.b16 %v536
      %v541 = vunpack.c.l.b16 %v537
      %v542 = vpack.c.b16 %v541, %v540
      %v545 = vunpack.c.l.b16 %v531
      %v546 = vunpack.c.l.b16 %v532
      %v547 = vpack.c.b16 %v546, %v545
      %548 = vrot.lane.b32.xlu0 %v547, 127
      %v549 = vpop.permute.xlu0 %548
      %vm550 = vcmask 97280
      %v552 = vsel %vm550, %v542, 0
      %vm554 = vcmask 1045504
      %v556 = vsel %vm554, %v549, 0
      %558 = vmatprep.subr.bf16.mxu0 0
      %559 = vmatpush1.bf16.msra.mxu0 %v556
      %560 = vmatprep.subr.bf16.mxu0 0
      %561 = vmatpush1.bf16.msra.mxu0 0
      %562 = vmatprep.subr.bf16.mxu0 0
      %563 = vmatpush1.bf16.msra.mxu0 0
      %564 = vmatprep.subr.bf16.mxu0 0
      %565 = vmatpush1.bf16.msra.mxu0 0
      %566 = vmatprep.subr.bf16.mxu0 0
      %567 = vmatpush1.bf16.msra.mxu0 0
      %568 = vmatprep.subr.bf16.mxu0 0
      %569 = vmatpush1.bf16.msra.mxu0 0
      %570 = vmatprep.subr.bf16.mxu0 0
      %571 = vmatpush1.bf16.msra.mxu0 0
      %572 = vmatprep.subr.bf16.mxu0 0
      %573 = vmatpush1.bf16.msra.mxu0 0
      %574 = vmatprep.subr.bf16.mxu0 0
      %575 = vmatpush1.bf16.msra.mxu0 0
      %576 = vmatprep.subr.bf16.mxu0 0
      %577 = vmatpush1.bf16.msra.mxu0 0
      %578 = vmatprep.subr.bf16.mxu0 0
      %579 = vmatpush1.bf16.msra.mxu0 0
      %580 = vmatprep.subr.bf16.mxu0 0
      %581 = vmatpush1.bf16.msra.mxu0 0
      %582 = vmatprep.subr.bf16.mxu0 0
      %583 = vmatpush1.bf16.msra.mxu0 0
      %584 = vmatprep.subr.bf16.mxu0 0
      %585 = vmatpush1.bf16.msra.mxu0 0
      %586 = vmatprep.subr.bf16.mxu0 0
      %587 = vmatpush1.bf16.msra.mxu0 0
      %588 = vmatprep.subr.bf16.mxu0 0
      %589 = vmatpush1.bf16.msra.mxu0 0
      %590 = vmatprep.mubr.bf16.mxu0 0
      %591 = vmatmul.mubr.bf16.gmra.mrb[0].mxu0 %v552
      %v592 = vpop.f32.mrb[0].mxu0
      %v593 = vadd.f32 0.0, %v592
      %v594 = vpop.f32.mrb[0].mxu0
      %v595 = vpop.f32.mrb[0].mxu0
      %v596 = vadd.f32 0.0, %v595
      %v597 = vpop.f32.mrb[0].mxu0
      %598 = vdwg.mxu0
      %v601 = vunpack.c.l.b16 %v533
      %v602 = vunpack.c.l.b16 %v534
      %v603 = vpack.c.b16 %v602, %v601
      %v605 = vsel %vm550, %v603, 0
      %v608 = vsel %vm554, %v547, 0
      %610 = vmatprep.subr.bf16.mxu0 0
      %611 = vmatpush1.bf16.msra.mxu0 %v608
      %612 = vmatprep.subr.bf16.mxu0 0
      %613 = vmatpush1.bf16.msra.mxu0 0
      %614 = vmatprep.subr.bf16.mxu0 0
      %615 = vmatpush1.bf16.msra.mxu0 0
      %616 = vmatprep.subr.bf16.mxu0 0
      %617 = vmatpush1.bf16.msra.mxu0 0
      %618 = vmatprep.subr.bf16.mxu0 0
      %619 = vmatpush1.bf16.msra.mxu0 0
      %620 = vmatprep.subr.bf16.mxu0 0
      %621 = vmatpush1.bf16.msra.mxu0 0
      %622 = vmatprep.subr.bf16.mxu0 0
      %623 = vmatpush1.bf16.msra.mxu0 0
      %624 = vmatprep.subr.bf16.mxu0 0
      %625 = vmatpush1.bf16.msra.mxu0 0
      %626 = vmatprep.subr.bf16.mxu0 0
      %627 = vmatpush1.bf16.msra.mxu0 0
      %628 = vmatprep.subr.bf16.mxu0 0
      %629 = vmatpush1.bf16.msra.mxu0 0
      %630 = vmatprep.subr.bf16.mxu0 0
      %631 = vmatpush1.bf16.msra.mxu0 0
      %632 = vmatprep.subr.bf16.mxu0 0
      %633 = vmatpush1.bf16.msra.mxu0 0
      %634 = vmatprep.subr.bf16.mxu0 0
      %635 = vmatpush1.bf16.msra.mxu0 0
      %636 = vmatprep.subr.bf16.mxu0 0
      %637 = vmatpush1.bf16.msra.mxu0 0
      %638 = vmatprep.subr.bf16.mxu0 0
      %639 = vmatpush1.bf16.msra.mxu0 0
      %640 = vmatprep.subr.bf16.mxu0 0
      %641 = vmatpush1.bf16.msra.mxu0 0
      %642 = vmatprep.mubr.bf16.mxu0 0
      %643 = vmatmul.mubr.bf16.gmra.mrb[0].mxu0 %v605
      %v644 = vpop.f32.mrb[0].mxu0
      %v645 = vadd.f32 %v593, %v644
      %v646 = vpop.f32.mrb[0].mxu0
      %v647 = vpop.f32.mrb[0].mxu0
      %v648 = vadd.f32 %v596, %v647
      %v649 = vpop.f32.mrb[0].mxu0
      %650 = vdwg.mxu0
      %s651 = scalar_lea.vmem %s1, 16
      %v652 = vld [vmem:[%s651] sm:$0xf]
      %v653 = vld [vmem:[%s651 + $0x4] sm:$0xf]
      %v656 = vunpack.c.l.b16 %v652
      %v657 = vunpack.c.l.b16 %v653
      %v658 = vpack.c.b16 %v657, %v656
      %v659 = vunpack.c.h.b16 %v531
      %v660 = vunpack.c.h.b16 %v532
      %v661 = vpack.c.b16 %v660, %v659
      %662 = vrot.lane.b32.xlu0 %v547, 117
      %v663 = vpop.permute.xlu0 %662
      %664 = vrot.lane.b32.xlu0 %v661, 117
      %v665 = vpop.permute.xlu0 %664
      %vm666 = vcmask 957440
      %v667 = vsel %vm666, %v663, %v665
      %v669 = vsel %vm550, %v658, 0
      %v672 = vsel %vm554, %v667, 0
      %674 = vmatprep.subr.bf16.mxu0 0
      %675 = vmatpush1.bf16.msra.mxu0 %v672
      %676 = vmatprep.subr.bf16.mxu0 0
      %677 = vmatpush1.bf16.msra.mxu0 0
      %678 = vmatprep.subr.bf16.mxu0 0
      %679 = vmatpush1.bf16.msra.mxu0 0
      %680 = vmatprep.subr.bf16.mxu0 0
      %681 = vmatpush1.bf16.msra.mxu0 0
      %682 = vmatprep.subr.bf16.mxu0 0
      %683 = vmatpush1.bf16.msra.mxu0 0
      %684 = vmatprep.subr.bf16.mxu0 0
      %685 = vmatpush1.bf16.msra.mxu0 0
      %686 = vmatprep.subr.bf16.mxu0 0
      %687 = vmatpush1.bf16.msra.mxu0 0
      %688 = vmatprep.subr.bf16.mxu0 0
      %689 = vmatpush1.bf16.msra.mxu0 0
      %690 = vmatprep.subr.bf16.mxu0 0
      %691 = vmatpush1.bf16.msra.mxu0 0
      %692 = vmatprep.subr.bf16.mxu0 0
      %693 = vmatpush1.bf16.msra.mxu0 0
      %694 = vmatprep.subr.bf16.mxu0 0
      %695 = vmatpush1.bf16.msra.mxu0 0
      %696 = vmatprep.subr.bf16.mxu0 0
      %697 = vmatpush1.bf16.msra.mxu0 0
      %698 = vmatprep.subr.bf16.mxu0 0
      %699 = vmatpush1.bf16.msra.mxu0 0
      %700 = vmatprep.subr.bf16.mxu0 0
      %701 = vmatpush1.bf16.msra.mxu0 0
      %702 = vmatprep.subr.bf16.mxu0 0
      %703 = vmatpush1.bf16.msra.mxu0 0
      %704 = vmatprep.subr.bf16.mxu0 0
      %705 = vmatpush1.bf16.msra.mxu0 0
      %706 = vmatprep.mubr.bf16.mxu0 0
      %707 = vmatmul.mubr.bf16.gmra.mrb[0].mxu0 %v669
      %v708 = vpop.f32.mrb[0].mxu0
      %v709 = vadd.f32 0.0, %v708
      %v710 = vpop.f32.mrb[0].mxu0
      %v711 = vpop.f32.mrb[0].mxu0
      %v712 = vadd.f32 0.0, %v711
      %v713 = vpop.f32.mrb[0].mxu0
      %714 = vdwg.mxu0
      %v715 = vadd.f32 %v645, %v709
      %v716 = vadd.f32 %v648, %v712
      %s717 = scalar_lea.vmem %s1, 24
      %v718 = vld [vmem:[%s717] sm:$0xf]
      %v719 = vld [vmem:[%s717 + $0x4] sm:$0xf]
      %v722 = vunpack.c.l.b16 %v718
      %v723 = vunpack.c.l.b16 %v719
      %v724 = vpack.c.b16 %v723, %v722
      %725 = vrot.lane.b32.xlu0 %v547, 116
      %v726 = vpop.permute.xlu0 %725
      %727 = vrot.lane.b32.xlu0 %v661, 116
      %v728 = vpop.permute.xlu0 %727
      %vm729 = vcmask 949248
      %v730 = vsel %vm729, %v726, %v728
      %v732 = vsel %vm550, %v724, 0
      %v735 = vsel %vm554, %v730, 0
      %737 = vmatprep.subr.bf16.mxu0 0
      %738 = vmatpush1.bf16.msra.mxu0 %v735
      %739 = vmatprep.subr.bf16.mxu0 0
      %740 = vmatpush1.bf16.msra.mxu0 0
      %741 = vmatprep.subr.bf16.mxu0 0
      %742 = vmatpush1.bf16.msra.mxu0 0
      %743 = vmatprep.subr.bf16.mxu0 0
      %744 = vmatpush1.bf16.msra.mxu0 0
      %745 = vmatprep.subr.bf16.mxu0 0
      %746 = vmatpush1.bf16.msra.mxu0 0
      %747 = vmatprep.subr.bf16.mxu0 0
      %748 = vmatpush1.bf16.msra.mxu0 0
      %749 = vmatprep.subr.bf16.mxu0 0
      %750 = vmatpush1.bf16.msra.mxu0 0
      %751 = vmatprep.subr.bf16.mxu0 0
      %752 = vmatpush1.bf16.msra.mxu0 0
      %753 = vmatprep.subr.bf16.mxu0 0
      %754 = vmatpush1.bf16.msra.mxu0 0
      %755 = vmatprep.subr.bf16.mxu0 0
      %756 = vmatpush1.bf16.msra.mxu0 0
      %757 = vmatprep.subr.bf16.mxu0 0
      %758 = vmatpush1.bf16.msra.mxu0 0
      %759 = vmatprep.subr.bf16.mxu0 0
      %760 = vmatpush1.bf16.msra.mxu0 0
      %761 = vmatprep.subr.bf16.mxu0 0
      %762 = vmatpush1.bf16.msra.mxu0 0
      %763 = vmatprep.subr.bf16.mxu0 0
      %764 = vmatpush1.bf16.msra.mxu0 0
      %765 = vmatprep.subr.bf16.mxu0 0
      %766 = vmatpush1.bf16.msra.mxu0 0
      %767 = vmatprep.subr.bf16.mxu0 0
      %768 = vmatpush1.bf16.msra.mxu0 0
      %769 = vmatprep.mubr.bf16.mxu0 0
      %770 = vmatmul.mubr.bf16.gmra.mrb[0].mxu0 %v732
      %v771 = vpop.f32.mrb[0].mxu0
      %v772 = vadd.f32 0.0, %v771
      %v773 = vpop.f32.mrb[0].mxu0
      %v774 = vpop.f32.mrb[0].mxu0
      %v775 = vadd.f32 0.0, %v774
      %v776 = vpop.f32.mrb[0].mxu0
      %777 = vdwg.mxu0
      %v778 = vadd.f32 %v715, %v772
      %v779 = vadd.f32 %v716, %v775
      %v780 = vld [vmem:[%s2] sm:$0xff]
      %v781 = vld [vmem:[%s2 + $0x8] sm:$0xff]
      %783 = vset.pattern.permute.xlu0 0
      %784 = vperm.xlu0 %783, %v780
      %v785 = vpop.permute.xlu0 %784
      %788 = vset.pattern.permute.xlu0 0
      %789 = vperm.xlu0 %788, %v781
      %v790 = vpop.permute.xlu0 %789
      %v792 = vmul.f32 %v778, %v785
      %v793 = vmul.f32 %v779, %v790
      %v794 = vld [vmem:[%s3] sm:$0xff]
      %v795 = vld [vmem:[%s3 + $0x8] sm:$0xff]
      %797 = vset.pattern.permute.xlu0 0
      %798 = vperm.xlu0 %797, %v794
      %v799 = vpop.permute.xlu0 %798
      %802 = vset.pattern.permute.xlu0 0
      %803 = vperm.xlu0 %802, %v795
      %v804 = vpop.permute.xlu0 %803
      %v806 = vadd.f32 %v792, %v799
      %v807 = vadd.f32 %v793, %v804
      %v808 = vadd.f32 %v806, 3.0
      %v809 = vadd.f32 %v807, 3.0
      %v810 = vmax.f32 %v808, 0.0
      %v811 = vmax.f32 %v809, 0.0
      %v812 = vmin.f32 %v810, 6.0
      %v813 = vmin.f32 %v811, 6.0
      %v814 = vmul.f32 %v806, %v812
      %v815 = vmul.f32 %v807, %v813
      %v816 = vmul.f32 %v814, 0.16666667
      %v817 = vmul.f32 %v815, 0.16666667
      %v818 = vld [vmem:[%s14] sm:$0x1]
      %s819 = ssub.s32 %s530, 1
      %v820 = vstv %s819
      %v821 = vadd.s32 %v818, %v820
      %vm822 = vcmp.ge.s32.totalorder %v821, 0
      %vm823 = vcmp.lt.s32.totalorder %v821, 8
      %vm824 = vmand %vm822, %vm823
      %v825 = vld [vmem:[%s13] sm:$0x1]
      %v826 = vsel %vm824, %v825, 0.0
      %v827 = vld [vmem:[%s4] sm:$0xff]
      %v828 = vld [vmem:[%s4 + $0x8] sm:$0xff]
      %vm829 = vcmask 130048
      %v831 = vsel %vm829, %v827, 0
      %v834 = vsel %vm829, %v828, 0
      %836 = vmatprep.subr.mxu0 0.0
      %837 = vmatpush1.msra.mxu0 %v816
      %838 = vmatprep.subr.mxu0 0.0
      %839 = vmatpush1.msra.mxu0 %v817
      %840 = vmatprep.subr.mxu0 0.0
      %841 = vmatpush1.msra.mxu0 0.0
      %842 = vmatprep.subr.mxu0 0.0
      %843 = vmatpush1.msra.mxu0 0.0
      %844 = vmatprep.subr.mxu0 0.0
      %845 = vmatpush1.msra.mxu0 0.0
      %846 = vmatprep.subr.mxu0 0.0
      %847 = vmatpush1.msra.mxu0 0.0
      %848 = vmatprep.subr.mxu0 0.0
      %849 = vmatpush1.msra.mxu0 0.0
      %850 = vmatprep.subr.mxu0 0.0
      %851 = vmatpush1.msra.mxu0 0.0
      %852 = vmatprep.subr.mxu0 0.0
      %853 = vmatpush1.msra.mxu0 0.0
      %854 = vmatprep.subr.mxu0 0.0
      %855 = vmatpush1.msra.mxu0 0.0
      %856 = vmatprep.subr.mxu0 0.0
      %857 = vmatpush1.msra.mxu0 0.0
      %858 = vmatprep.subr.mxu0 0.0
      %859 = vmatpush1.msra.mxu0 0.0
      %860 = vmatprep.subr.mxu0 0.0
      %861 = vmatpush1.msra.mxu0 0.0
      %862 = vmatprep.subr.mxu0 0.0
      %863 = vmatpush1.msra.mxu0 0.0
      %864 = vmatprep.subr.mxu0 0.0
      %865 = vmatpush1.msra.mxu0 0.0
      %866 = vmatprep.subr.mxu0 0.0
      %867 = vmatpush1.msra.mxu0 0.0
      %868 = vmatprep.subr.mxu0 0.0
      %869 = vmatpush1.msra.mxu0 0.0
      %870 = vmatprep.subr.mxu0 0.0
      %871 = vmatpush1.msra.mxu0 0.0
      %872 = vmatprep.subr.mxu0 0.0
      %873 = vmatpush1.msra.mxu0 0.0
      %874 = vmatprep.subr.mxu0 0.0
      %875 = vmatpush1.msra.mxu0 0.0
      %876 = vmatprep.subr.mxu0 0.0
      %877 = vmatpush1.msra.mxu0 0.0
      %878 = vmatprep.subr.mxu0 0.0
      %879 = vmatpush1.msra.mxu0 0.0
      %880 = vmatprep.subr.mxu0 0.0
      %881 = vmatpush1.msra.mxu0 0.0
      %882 = vmatprep.subr.mxu0 0.0
      %883 = vmatpush1.msra.mxu0 0.0
      %884 = vmatprep.subr.mxu0 0.0
      %885 = vmatpush1.msra.mxu0 0.0
      %886 = vmatprep.subr.mxu0 0.0
      %887 = vmatpush1.msra.mxu0 0.0
      %888 = vmatprep.subr.mxu0 0.0
      %889 = vmatpush1.msra.mxu0 0.0
      %890 = vmatprep.subr.mxu0 0.0
      %891 = vmatpush1.msra.mxu0 0.0
      %892 = vmatprep.subr.mxu0 0.0
      %893 = vmatpush1.msra.mxu0 0.0
      %894 = vmatprep.subr.mxu0 0.0
      %895 = vmatpush1.msra.mxu0 0.0
      %896 = vmatprep.subr.mxu0 0.0
      %897 = vmatpush1.msra.mxu0 0.0
      %898 = vmatprep.subr.mxu0 0.0
      %899 = vmatpush1.msra.mxu0 0.0
      %900 = vmatprep.mubr.f32.mxu0 0.0
      %901 = vmatmul.mubr.f32.gmra.mrb[0].mxu0 %v831
      %v902 = vpop.f32.mrb[0].mxu0
      %v903 = vadd.f32 0.0, %v902
      %v904 = vpop.f32.mrb[0].mxu0
      %905 = vmatprep.mubr.f32.mxu0 0.0
      %906 = vmatmul.mubr.f32.gmra.mrb[0].mxu0 %v834
      %v907 = vpop.f32.mrb[0].mxu0
      %v908 = vadd.f32 0.0, %v907
      %v909 = vpop.f32.mrb[0].mxu0
      %910 = vdwg.mxu0
      %v911 = vld [vmem:[%s5] sm:$0xff]
      %v912 = vld [vmem:[%s5 + $0x8] sm:$0xff]
      %914 = vset.pattern.permute.xlu0 0
      %915 = vperm.xlu0 %914, %v911
      %v916 = vpop.permute.xlu0 %915
      %919 = vset.pattern.permute.xlu0 0
      %920 = vperm.xlu0 %919, %v912
      %v921 = vpop.permute.xlu0 %920
      %v923 = vmul.f32 %v903, %v916
      %v924 = vmul.f32 %v908, %v921
      %v925 = vld [vmem:[%s6] sm:$0xff]
      %v926 = vld [vmem:[%s6 + $0x8] sm:$0xff]
      %928 = vset.pattern.permute.xlu0 0
      %929 = vperm.xlu0 %928, %v925
      %v930 = vpop.permute.xlu0 %929
      %933 = vset.pattern.permute.xlu0 0
      %934 = vperm.xlu0 %933, %v926
      %v935 = vpop.permute.xlu0 %934
      %v937 = vadd.f32 %v923, %v930
      %v938 = vadd.f32 %v924, %v935
      %v939 = vmax.f32 %v937, 0.0
      %v940 = vmax.f32 %v938, 0.0
      %v942 = vlaneseq
      %v943 = vshrl.u32 %v942, 7
      %v944 = vsub.s32 0, %v943
      %v945 = vrot.slane %v826, %v944
      %v947 = vmul.f32 %v939, %v945
      %v948 = vmul.f32 %v940, %v945
      %v949 = vld [vmem:[%s7] sm:$0xff]
      %v950 = vld [vmem:[%s7 + $0x8] sm:$0xff]
      %952 = vset.pattern.permute.xlu0 0
      %953 = vperm.xlu0 %952, %v949
      %v954 = vpop.permute.xlu0 %953
      %957 = vset.pattern.permute.xlu0 0
      %958 = vperm.xlu0 %957, %v950
      %v959 = vpop.permute.xlu0 %958
      %v961 = vmul.f32 %v954, %v947
      %v962 = vmul.f32 %v959, %v948
      %963 = vset.pattern.permute.xlu0 1
      %964 = vperm.xlu0 %963, %v949
      %v965 = vpop.permute.xlu0 %964
      %967 = vset.pattern.permute.xlu0 1
      %968 = vperm.xlu0 %967, %v950
      %v969 = vpop.permute.xlu0 %968
      %v971 = vmul.f32 %v965, %v947
      %v972 = vmul.f32 %v969, %v948
      %975 = vrot.lane.b32.xlu0 %v971, 127
      %v976 = vpop.permute.xlu0 %975
      %977 = vrot.lane.b32.xlu0 %v972, 127
      %v978 = vpop.permute.xlu0 %977
      %v981 = vadd.f32 %v961, %v976
      %v982 = vadd.f32 %v962, %v978
      %983 = vset.pattern.permute.xlu0 2
      %984 = vperm.xlu0 %983, %v949
      %v985 = vpop.permute.xlu0 %984
      %987 = vset.pattern.permute.xlu0 2
      %988 = vperm.xlu0 %987, %v950
      %v989 = vpop.permute.xlu0 %988
      %v991 = vmul.f32 %v985, %v947
      %v992 = vmul.f32 %v989, %v948
      %995 = vrot.lane.b32.xlu0 %v991, 126
      %v996 = vpop.permute.xlu0 %995
      %997 = vrot.lane.b32.xlu0 %v992, 126
      %v998 = vpop.permute.xlu0 %997
      %v1001 = vadd.f32 %v981, %v996
      %v1002 = vadd.f32 %v982, %v998
      %1003 = vset.pattern.permute.xlu0 3
      %1004 = vperm.xlu0 %1003, %v949
      %v1005 = vpop.permute.xlu0 %1004
      %1007 = vset.pattern.permute.xlu0 3
      %1008 = vperm.xlu0 %1007, %v950
      %v1009 = vpop.permute.xlu0 %1008
      %v1011 = vmul.f32 %v1005, %v947
      %v1012 = vmul.f32 %v1009, %v948
      %1015 = vrot.lane.b32.xlu0 %v1011, 117
      %v1016 = vpop.permute.xlu0 %1015
      %1017 = vrot.lane.b32.xlu0 %v1012, 117
      %v1018 = vpop.permute.xlu0 %1017
      %v1021 = vadd.f32 %v1001, %v1016
      %v1022 = vadd.f32 %v1002, %v1018
      %1023 = vset.pattern.permute.xlu0 4
      %1024 = vperm.xlu0 %1023, %v949
      %v1025 = vpop.permute.xlu0 %1024
      %1027 = vset.pattern.permute.xlu0 4
      %1028 = vperm.xlu0 %1027, %v950
      %v1029 = vpop.permute.xlu0 %1028
      %v1031 = vmul.f32 %v1025, %v947
      %v1032 = vmul.f32 %v1029, %v948
      %1035 = vrot.lane.b32.xlu0 %v1031, 116
      %v1036 = vpop.permute.xlu0 %1035
      %1037 = vrot.lane.b32.xlu0 %v1032, 116
      %v1038 = vpop.permute.xlu0 %1037
      %v1041 = vadd.f32 %v1021, %v1036
      %v1042 = vadd.f32 %v1022, %v1038
      %1043 = vset.pattern.permute.xlu0 5
      %1044 = vperm.xlu0 %1043, %v949
      %v1045 = vpop.permute.xlu0 %1044
      %1047 = vset.pattern.permute.xlu0 5
      %1048 = vperm.xlu0 %1047, %v950
      %v1049 = vpop.permute.xlu0 %1048
      %v1051 = vmul.f32 %v1045, %v947
      %v1052 = vmul.f32 %v1049, %v948
      %1055 = vrot.lane.b32.xlu0 %v1051, 115
      %v1056 = vpop.permute.xlu0 %1055
      %1057 = vrot.lane.b32.xlu0 %v1052, 115
      %v1058 = vpop.permute.xlu0 %1057
      %v1061 = vadd.f32 %v1041, %v1056
      %v1062 = vadd.f32 %v1042, %v1058
      %1063 = vset.pattern.permute.xlu0 6
      %1064 = vperm.xlu0 %1063, %v949
      %v1065 = vpop.permute.xlu0 %1064
      %1067 = vset.pattern.permute.xlu0 6
      %1068 = vperm.xlu0 %1067, %v950
      %v1069 = vpop.permute.xlu0 %1068
      %v1071 = vmul.f32 %v1065, %v947
      %v1072 = vmul.f32 %v1069, %v948
      %1075 = vrot.lane.b32.xlu0 %v1071, 106
      %v1076 = vpop.permute.xlu0 %1075
      %1077 = vrot.lane.b32.xlu0 %v1072, 106
      %v1078 = vpop.permute.xlu0 %1077
      %v1081 = vadd.f32 %v1061, %v1076
      %v1082 = vadd.f32 %v1062, %v1078
      %1083 = vset.pattern.permute.xlu0 7
      %1084 = vperm.xlu0 %1083, %v949
      %v1085 = vpop.permute.xlu0 %1084
      %1087 = vset.pattern.permute.xlu0 7
      %1088 = vperm.xlu0 %1087, %v950
      %v1089 = vpop.permute.xlu0 %1088
      %v1091 = vmul.f32 %v1085, %v947
      %v1092 = vmul.f32 %v1089, %v948
      %1095 = vrot.lane.b32.xlu0 %v1091, 105
      %v1096 = vpop.permute.xlu0 %1095
      %1097 = vrot.lane.b32.xlu0 %v1092, 105
      %v1098 = vpop.permute.xlu0 %1097
      %v1101 = vadd.f32 %v1081, %v1096
      %v1102 = vadd.f32 %v1082, %v1098
      %1103 = vset.pattern.permute.xlu0 8
      %1104 = vperm.xlu0 %1103, %v949
      %v1105 = vpop.permute.xlu0 %1104
      %1107 = vset.pattern.permute.xlu0 8
      %1108 = vperm.xlu0 %1107, %v950
      %v1109 = vpop.permute.xlu0 %1108
      %v1111 = vmul.f32 %v1105, %v947
      %v1112 = vmul.f32 %v1109, %v948
      %1115 = vrot.lane.b32.xlu0 %v1111, 104
      %v1116 = vpop.permute.xlu0 %1115
      %1117 = vrot.lane.b32.xlu0 %v1112, 104
      %v1118 = vpop.permute.xlu0 %1117
      %v1121 = vadd.f32 %v1101, %v1116
      %v1122 = vadd.f32 %v1102, %v1118
      %v1123 = vld [vmem:[%s8] sm:$0xff]
      %v1124 = vld [vmem:[%s8 + $0x8] sm:$0xff]
      %1126 = vset.pattern.permute.xlu0 0
      %1127 = vperm.xlu0 %1126, %v1123
      %v1128 = vpop.permute.xlu0 %1127
      %1131 = vset.pattern.permute.xlu0 0
      %1132 = vperm.xlu0 %1131, %v1124
      %v1133 = vpop.permute.xlu0 %1132
      %v1135 = vmul.f32 %v1121, %v1128
      %v1136 = vmul.f32 %v1122, %v1133
      %v1137 = vld [vmem:[%s9] sm:$0xff]
      %v1138 = vld [vmem:[%s9 + $0x8] sm:$0xff]
      %1140 = vset.pattern.permute.xlu0 0
      %1141 = vperm.xlu0 %1140, %v1137
      %v1142 = vpop.permute.xlu0 %1141
      %1145 = vset.pattern.permute.xlu0 0
      %1146 = vperm.xlu0 %1145, %v1138
      %v1147 = vpop.permute.xlu0 %1146
      %v1149 = vadd.f32 %v1135, %v1142
      %v1150 = vadd.f32 %v1136, %v1147
      %v1151 = vmax.f32 %v1149, 0.0
      %v1152 = vmax.f32 %v1150, 0.0
      %v1153 = vld [vmem:[%s10] sm:$0xff]
      %v1154 = vld [vmem:[%s10 + $0x8] sm:$0xff]
      %v1156 = vsel %vm829, %v1153, 0
      %v1159 = vsel %vm829, %v1154, 0
      %1161 = vmatprep.subr.mxu0 0.0
      %1162 = vmatpush1.msra.mxu0 %v1151
      %1163 = vmatprep.subr.mxu0 0.0
      %1164 = vmatpush1.msra.mxu0 %v1152
      %1165 = vmatprep.subr.mxu0 0.0
      %1166 = vmatpush1.msra.mxu0 0.0
      %1167 = vmatprep.subr.mxu0 0.0
      %1168 = vmatpush1.msra.mxu0 0.0
      %1169 = vmatprep.subr.mxu0 0.0
      %1170 = vmatpush1.msra.mxu0 0.0
      %1171 = vmatprep.subr.mxu0 0.0
      %1172 = vmatpush1.msra.mxu0 0.0
      %1173 = vmatprep.subr.mxu0 0.0
      %1174 = vmatpush1.msra.mxu0 0.0
      %1175 = vmatprep.subr.mxu0 0.0
      %1176 = vmatpush1.msra.mxu0 0.0
      %1177 = vmatprep.subr.mxu0 0.0
      %1178 = vmatpush1.msra.mxu0 0.0
      %1179 = vmatprep.subr.mxu0 0.0
      %1180 = vmatpush1.msra.mxu0 0.0
      %1181 = vmatprep.subr.mxu0 0.0
      %1182 = vmatpush1.msra.mxu0 0.0
      %1183 = vmatprep.subr.mxu0 0.0
      %1184 = vmatpush1.msra.mxu0 0.0
      %1185 = vmatprep.subr.mxu0 0.0
      %1186 = vmatpush1.msra.mxu0 0.0
      %1187 = vmatprep.subr.mxu0 0.0
      %1188 = vmatpush1.msra.mxu0 0.0
      %1189 = vmatprep.subr.mxu0 0.0
      %1190 = vmatpush1.msra.mxu0 0.0
      %1191 = vmatprep.subr.mxu0 0.0
      %1192 = vmatpush1.msra.mxu0 0.0
      %1193 = vmatprep.subr.mxu0 0.0
      %1194 = vmatpush1.msra.mxu0 0.0
      %1195 = vmatprep.subr.mxu0 0.0
      %1196 = vmatpush1.msra.mxu0 0.0
      %1197 = vmatprep.subr.mxu0 0.0
      %1198 = vmatpush1.msra.mxu0 0.0
      %1199 = vmatprep.subr.mxu0 0.0
      %1200 = vmatpush1.msra.mxu0 0.0
      %1201 = vmatprep.subr.mxu0 0.0
      %1202 = vmatpush1.msra.mxu0 0.0
      %1203 = vmatprep.subr.mxu0 0.0
      %1204 = vmatpush1.msra.mxu0 0.0
      %1205 = vmatprep.subr.mxu0 0.0
      %1206 = vmatpush1.msra.mxu0 0.0
      %1207 = vmatprep.subr.mxu0 0.0
      %1208 = vmatpush1.msra.mxu0 0.0
      %1209 = vmatprep.subr.mxu0 0.0
      %1210 = vmatpush1.msra.mxu0 0.0
      %1211 = vmatprep.subr.mxu0 0.0
      %1212 = vmatpush1.msra.mxu0 0.0
      %1213 = vmatprep.subr.mxu0 0.0
      %1214 = vmatpush1.msra.mxu0 0.0
      %1215 = vmatprep.subr.mxu0 0.0
      %1216 = vmatpush1.msra.mxu0 0.0
      %1217 = vmatprep.subr.mxu0 0.0
      %1218 = vmatpush1.msra.mxu0 0.0
      %1219 = vmatprep.subr.mxu0 0.0
      %1220 = vmatpush1.msra.mxu0 0.0
      %1221 = vmatprep.subr.mxu0 0.0
      %1222 = vmatpush1.msra.mxu0 0.0
      %1223 = vmatprep.subr.mxu0 0.0
      %1224 = vmatpush1.msra.mxu0 0.0
      %1225 = vmatprep.mubr.f32.mxu0 0.0
      %1226 = vmatmul.mubr.f32.gmra.mrb[0].mxu0 %v1156
      %v1227 = vpop.f32.mrb[0].mxu0
      %v1228 = vadd.f32 0.0, %v1227
      %v1229 = vpop.f32.mrb[0].mxu0
      %1230 = vmatprep.mubr.f32.mxu0 0.0
      %1231 = vmatmul.mubr.f32.gmra.mrb[0].mxu0 %v1159
      %v1232 = vpop.f32.mrb[0].mxu0
      %v1233 = vadd.f32 0.0, %v1232
      %v1234 = vpop.f32.mrb[0].mxu0
      %1235 = vdwg.mxu0
      %v1236 = vld [vmem:[%s11] sm:$0xff]
      %v1237 = vld [vmem:[%s11 + $0x8] sm:$0xff]
      %1239 = vset.pattern.permute.xlu0 0
      %1240 = vperm.xlu0 %1239, %v1236
      %v1241 = vpop.permute.xlu0 %1240
      %1244 = vset.pattern.permute.xlu0 0
      %1245 = vperm.xlu0 %1244, %v1237
      %v1246 = vpop.permute.xlu0 %1245
      %v1248 = vmul.f32 %v1228, %v1241
      %v1249 = vmul.f32 %v1233, %v1246
      %v1250 = vld [vmem:[%s12] sm:$0xff]
      %v1251 = vld [vmem:[%s12 + $0x8] sm:$0xff]
      %1253 = vset.pattern.permute.xlu0 0
      %1254 = vperm.xlu0 %1253, %v1250
      %v1255 = vpop.permute.xlu0 %1254
      %1258 = vset.pattern.permute.xlu0 0
      %1259 = vperm.xlu0 %1258, %v1251
      %v1260 = vpop.permute.xlu0 %1259
      %v1262 = vadd.f32 %v1248, %v1255
      %v1263 = vadd.f32 %v1249, %v1260
      %1266 = vrot.lane.b32.xlu0 %v816, 116
      %v1267 = vpop.permute.xlu0 %1266
      %1268 = vrot.lane.b32.xlu0 %v817, 116
      %v1269 = vpop.permute.xlu0 %1268
      %v1272 = vadd.f32 %v1262, %v1267
      %v1273 = vadd.f32 %v1263, %v1269
      %v1276 = vcombine.high %v1272, %v1272
      %v1278 = vunpack.c.l.s4 1966171168
      %v1279 = vunpack.c.0.s8 %v1278
      %v1280 = vlaneseq
      %v1281 = vshrl.u32 %v1280, 7
      %v1282 = vsub.s32 %v1279, %v1281
      %v1283 = vrot.slane %v1272, %v1282
      %v1285 = vunpack.c.l.s4 1966171168
      %v1286 = vunpack.c.0.s8 %v1285
      %v1287 = vlaneseq
      %v1288 = vshrl.u32 %v1287, 7
      %v1289 = vsub.s32 %v1286, %v1288
      %v1290 = vrot.slane %v1276, %v1289
      %v1291 = vcombine.high %v1283, %v1283
      %v1292 = vcombine.high %v1290, %v1290
      %v1294 = vunpack.c.l.s4 1966171168
      %v1295 = vunpack.c.0.s8 %v1294
      %v1296 = vlaneseq
      %v1297 = vshrl.u32 %v1296, 7
      %v1298 = vsub.s32 %v1295, %v1297
      %v1299 = vrot.slane %v1283, %v1298
      %v1301 = vunpack.c.l.s4 1966171168
      %v1302 = vunpack.c.0.s8 %v1301
      %v1303 = vlaneseq
      %v1304 = vshrl.u32 %v1303, 7
      %v1305 = vsub.s32 %v1302, %v1304
      %v1306 = vrot.slane %v1290, %v1305
      %v1308 = vunpack.c.l.s4 1966171168
      %v1309 = vunpack.c.0.s8 %v1308
      %v1310 = vlaneseq
      %v1311 = vshrl.u32 %v1310, 7
      %v1312 = vsub.s32 %v1309, %v1311
      %v1313 = vrot.slane %v1291, %v1312
      %v1315 = vunpack.c.l.s4 1966171168
      %v1316 = vunpack.c.0.s8 %v1315
      %v1317 = vlaneseq
      %v1318 = vshrl.u32 %v1317, 7
      %v1319 = vsub.s32 %v1316, %v1318
      %v1320 = vrot.slane %v1292, %v1319
      %v1321 = vcombine.high %v1299, %v1299
      %v1322 = vcombine.high %v1306, %v1306
      %v1323 = vcombine.high %v1313, %v1313
      %v1324 = vcombine.high %v1320, %v1320
      %v1325 = vcombine.high %v1273, %v1273
      %v1327 = vunpack.c.l.s4 1966171168
      %v1328 = vunpack.c.0.s8 %v1327
      %v1329 = vlaneseq
      %v1330 = vshrl.u32 %v1329, 7
      %v1331 = vsub.s32 %v1328, %v1330
      %v1332 = vrot.slane %v1273, %v1331
      %v1334 = vunpack.c.l.s4 1966171168
      %v1335 = vunpack.c.0.s8 %v1334
      %v1336 = vlaneseq
      %v1337 = vshrl.u32 %v1336, 7
      %v1338 = vsub.s32 %v1335, %v1337
      %v1339 = vrot.slane %v1325, %v1338
      %v1340 = vcombine.high %v1332, %v1332
      %v1341 = vcombine.high %v1339, %v1339
      %v1343 = vunpack.c.l.s4 1966171168
      %v1344 = vunpack.c.0.s8 %v1343
      %v1345 = vlaneseq
      %v1346 = vshrl.u32 %v1345, 7
      %v1347 = vsub.s32 %v1344, %v1346
      %v1348 = vrot.slane %v1332, %v1347
      %v1350 = vunpack.c.l.s4 1966171168
      %v1351 = vunpack.c.0.s8 %v1350
      %v1352 = vlaneseq
      %v1353 = vshrl.u32 %v1352, 7
      %v1354 = vsub.s32 %v1351, %v1353
      %v1355 = vrot.slane %v1339, %v1354
      %v1357 = vunpack.c.l.s4 1966171168
      %v1358 = vunpack.c.0.s8 %v1357
      %v1359 = vlaneseq
      %v1360 = vshrl.u32 %v1359, 7
      %v1361 = vsub.s32 %v1358, %v1360
      %v1362 = vrot.slane %v1340, %v1361
      %v1364 = vunpack.c.l.s4 1966171168
      %v1365 = vunpack.c.0.s8 %v1364
      %v1366 = vlaneseq
      %v1367 = vshrl.u32 %v1366, 7
      %v1368 = vsub.s32 %v1365, %v1367
      %v1369 = vrot.slane %v1341, %v1368
      %v1370 = vcombine.high %v1348, %v1348
      %v1371 = vcombine.high %v1355, %v1355
      %v1372 = vcombine.high %v1362, %v1362
      %v1373 = vcombine.high %v1369, %v1369
      %vm1390 = vcmask 57344
      %1391 = vst.msk [vmem:[%s528] sm:$0x1] %vm1390, %v1299
      %1392 = vst.msk [vmem:[%s528 + $0x8] sm:$0x1] %vm1390, %v1313
      %1393 = vst.msk [vmem:[%s528 + $0x10] sm:$0x1] %vm1390, %v1321
      %1394 = vst.msk [vmem:[%s528 + $0x18] sm:$0x1] %vm1390, %v1323
      %1395 = vst.msk [vmem:[%s528 + $0x20] sm:$0x1] %vm1390, %v1306
      %1396 = vst.msk [vmem:[%s528 + $0x28] sm:$0x1] %vm1390, %v1320
      %1397 = vst.msk [vmem:[%s528 + $0x30] sm:$0x1] %vm1390, %v1322
      %1398 = vst.msk [vmem:[%s528 + $0x38] sm:$0x1] %vm1390, %v1324
      %1399 = vst.msk [vmem:[%s528 + $0x40] sm:$0x1] %vm1390, %v1348
      %1400 = vst.msk [vmem:[%s528 + $0x48] sm:$0x1] %vm1390, %v1362
      %1401 = vst.msk [vmem:[%s528 + $0x50] sm:$0x1] %vm1390, %v1370
      %1402 = vst.msk [vmem:[%s528 + $0x58] sm:$0x1] %vm1390, %v1372
      %1403 = vst.msk [vmem:[%s528 + $0x60] sm:$0x1] %vm1390, %v1355
      %1404 = vst.msk [vmem:[%s528 + $0x68] sm:$0x1] %vm1390, %v1369
      %1405 = vst.msk [vmem:[%s528 + $0x70] sm:$0x1] %vm1390, %v1371
      %1406 = vst.msk [vmem:[%s528 + $0x78] sm:$0x1] %vm1390, %v1373
      %v1407 = vlaneseq
      %v1408 = vshrl.u32 %v1407, 7
      %v1409 = vsub.s32 0, %v1408
      %v1410 = vrot.slane %v1299, %v1409
      %v1411 = vlaneseq
      %v1412 = vshrl.u32 %v1411, 7
      %v1413 = vsub.s32 0, %v1412
      %v1414 = vrot.slane %v1313, %v1413
      %v1415 = vlaneseq
      %v1416 = vshrl.u32 %v1415, 7
      %v1417 = vsub.s32 0, %v1416
      %v1418 = vrot.slane %v1321, %v1417
      %v1419 = vlaneseq
      %v1420 = vshrl.u32 %v1419, 7
      %v1421 = vsub.s32 0, %v1420
      %v1422 = vrot.slane %v1323, %v1421
      %v1423 = vlaneseq
      %v1424 = vshrl.u32 %v1423, 7
      %v1425 = vsub.s32 0, %v1424
      %v1426 = vrot.slane %v1306, %v1425
      %v1427 = vlaneseq
      %v1428 = vshrl.u32 %v1427, 7
      %v1429 = vsub.s32 0, %v1428
      %v1430 = vrot.slane %v1320, %v1429
      %v1431 = vlaneseq
      %v1432 = vshrl.u32 %v1431, 7
      %v1433 = vsub.s32 0, %v1432
      %v1434 = vrot.slane %v1322, %v1433
      %v1435 = vlaneseq
      %v1436 = vshrl.u32 %v1435, 7
      %v1437 = vsub.s32 0, %v1436
      %v1438 = vrot.slane %v1324, %v1437
      %v1439 = vlaneseq
      %v1440 = vshrl.u32 %v1439, 7
      %v1441 = vsub.s32 0, %v1440
      %v1442 = vrot.slane %v1348, %v1441
      %v1443 = vlaneseq
      %v1444 = vshrl.u32 %v1443, 7
      %v1445 = vsub.s32 0, %v1444
      %v1446 = vrot.slane %v1362, %v1445
      %v1447 = vlaneseq
      %v1448 = vshrl.u32 %v1447, 7
      %v1449 = vsub.s32 0, %v1448
      %v1450 = vrot.slane %v1370, %v1449
      %v1451 = vlaneseq
      %v1452 = vshrl.u32 %v1451, 7
      %v1453 = vsub.s32 0, %v1452
      %v1454 = vrot.slane %v1372, %v1453
      %v1455 = vlaneseq
      %v1456 = vshrl.u32 %v1455, 7
      %v1457 = vsub.s32 0, %v1456
      %v1458 = vrot.slane %v1355, %v1457
      %v1459 = vlaneseq
      %v1460 = vshrl.u32 %v1459, 7
      %v1461 = vsub.s32 0, %v1460
      %v1462 = vrot.slane %v1369, %v1461
      %v1463 = vlaneseq
      %v1464 = vshrl.u32 %v1463, 7
      %v1465 = vsub.s32 0, %v1464
      %v1466 = vrot.slane %v1371, %v1465
      %v1467 = vlaneseq
      %v1468 = vshrl.u32 %v1467, 7
      %v1469 = vsub.s32 0, %v1468
      %v1470 = vrot.slane %v1373, %v1469
      %1471 = vrot.lane.b32.xlu0 %v1410, 117
      %v1472 = vpop.permute.xlu0 %1471
      %1473 = vrot.lane.b32.xlu0 %v1414, 117
      %v1474 = vpop.permute.xlu0 %1473
      %1475 = vrot.lane.b32.xlu0 %v1418, 117
      %v1476 = vpop.permute.xlu0 %1475
      %1477 = vrot.lane.b32.xlu0 %v1422, 117
      %v1478 = vpop.permute.xlu0 %1477
      %1479 = vrot.lane.b32.xlu0 %v1426, 117
      %v1480 = vpop.permute.xlu0 %1479
      %1481 = vrot.lane.b32.xlu0 %v1430, 117
      %v1482 = vpop.permute.xlu0 %1481
      %1483 = vrot.lane.b32.xlu0 %v1434, 117
      %v1484 = vpop.permute.xlu0 %1483
      %1485 = vrot.lane.b32.xlu0 %v1438, 117
      %v1486 = vpop.permute.xlu0 %1485
      %1487 = vrot.lane.b32.xlu0 %v1442, 117
      %v1488 = vpop.permute.xlu0 %1487
      %1489 = vrot.lane.b32.xlu0 %v1446, 117
      %v1490 = vpop.permute.xlu0 %1489
      %1491 = vrot.lane.b32.xlu0 %v1450, 117
      %v1492 = vpop.permute.xlu0 %1491
      %1493 = vrot.lane.b32.xlu0 %v1454, 117
      %v1494 = vpop.permute.xlu0 %1493
      %1495 = vrot.lane.b32.xlu0 %v1458, 117
      %v1496 = vpop.permute.xlu0 %1495
      %1497 = vrot.lane.b32.xlu0 %v1462, 117
      %v1498 = vpop.permute.xlu0 %1497
      %1499 = vrot.lane.b32.xlu0 %v1466, 117
      %v1500 = vpop.permute.xlu0 %1499
      %1501 = vrot.lane.b32.xlu0 %v1470, 117
      %v1502 = vpop.permute.xlu0 %1501
      %1519 = vst.msk [vmem:[%s528 + $0x1] sm:$0x1] %vm1390, %v1472
      %1520 = vst.msk [vmem:[%s528 + $0x9] sm:$0x1] %vm1390, %v1474
      %1521 = vst.msk [vmem:[%s528 + $0x11] sm:$0x1] %vm1390, %v1476
      %1522 = vst.msk [vmem:[%s528 + $0x19] sm:$0x1] %vm1390, %v1478
      %1523 = vst.msk [vmem:[%s528 + $0x21] sm:$0x1] %vm1390, %v1480
      %1524 = vst.msk [vmem:[%s528 + $0x29] sm:$0x1] %vm1390, %v1482
      %1525 = vst.msk [vmem:[%s528 + $0x31] sm:$0x1] %vm1390, %v1484
      %1526 = vst.msk [vmem:[%s528 + $0x39] sm:$0x1] %vm1390, %v1486
      %1527 = vst.msk [vmem:[%s528 + $0x41] sm:$0x1] %vm1390, %v1488
      %1528 = vst.msk [vmem:[%s528 + $0x49] sm:$0x1] %vm1390, %v1490
      %1529 = vst.msk [vmem:[%s528 + $0x51] sm:$0x1] %vm1390, %v1492
      %1530 = vst.msk [vmem:[%s528 + $0x59] sm:$0x1] %vm1390, %v1494
      %1531 = vst.msk [vmem:[%s528 + $0x61] sm:$0x1] %vm1390, %v1496
      %1532 = vst.msk [vmem:[%s528 + $0x69] sm:$0x1] %vm1390, %v1498
      %1533 = vst.msk [vmem:[%s528 + $0x71] sm:$0x1] %vm1390, %v1500
      %1534 = vst.msk [vmem:[%s528 + $0x79] sm:$0x1] %vm1390, %v1502
      %1535 = vrot.lane.b32.xlu0 %v1410, 106
      %v1536 = vpop.permute.xlu0 %1535
      %1537 = vrot.lane.b32.xlu0 %v1414, 106
      %v1538 = vpop.permute.xlu0 %1537
      %1539 = vrot.lane.b32.xlu0 %v1418, 106
      %v1540 = vpop.permute.xlu0 %1539
      %1541 = vrot.lane.b32.xlu0 %v1422, 106
      %v1542 = vpop.permute.xlu0 %1541
      %1543 = vrot.lane.b32.xlu0 %v1426, 106
      %v1544 = vpop.permute.xlu0 %1543
      %1545 = vrot.lane.b32.xlu0 %v1430, 106
      %v1546 = vpop.permute.xlu0 %1545
      %1547 = vrot.lane.b32.xlu0 %v1434, 106
      %v1548 = vpop.permute.xlu0 %1547
      %1549 = vrot.lane.b32.xlu0 %v1438, 106
      %v1550 = vpop.permute.xlu0 %1549
      %1551 = vrot.lane.b32.xlu0 %v1442, 106
      %v1552 = vpop.permute.xlu0 %1551
      %1553 = vrot.lane.b32.xlu0 %v1446, 106
      %v1554 = vpop.permute.xlu0 %1553
      %1555 = vrot.lane.b32.xlu0 %v1450, 106
      %v1556 = vpop.permute.xlu0 %1555
      %1557 = vrot.lane.b32.xlu0 %v1454, 106
      %v1558 = vpop.permute.xlu0 %1557
      %1559 = vrot.lane.b32.xlu0 %v1458, 106
      %v1560 = vpop.permute.xlu0 %1559
      %1561 = vrot.lane.b32.xlu0 %v1462, 106
      %v1562 = vpop.permute.xlu0 %1561
      %1563 = vrot.lane.b32.xlu0 %v1466, 106
      %v1564 = vpop.permute.xlu0 %1563
      %1565 = vrot.lane.b32.xlu0 %v1470, 106
      %v1566 = vpop.permute.xlu0 %1565
      %1583 = vst.msk [vmem:[%s528 + $0x2] sm:$0x1] %vm1390, %v1536
      %1584 = vst.msk [vmem:[%s528 + $0xa] sm:$0x1] %vm1390, %v1538
      %1585 = vst.msk [vmem:[%s528 + $0x12] sm:$0x1] %vm1390, %v1540
      %1586 = vst.msk [vmem:[%s528 + $0x1a] sm:$0x1] %vm1390, %v1542
      %1587 = vst.msk [vmem:[%s528 + $0x22] sm:$0x1] %vm1390, %v1544
      %1588 = vst.msk [vmem:[%s528 + $0x2a] sm:$0x1] %vm1390, %v1546
      %1589 = vst.msk [vmem:[%s528 + $0x32] sm:$0x1] %vm1390, %v1548
      %1590 = vst.msk [vmem:[%s528 + $0x3a] sm:$0x1] %vm1390, %v1550
      %1591 = vst.msk [vmem:[%s528 + $0x42] sm:$0x1] %vm1390, %v1552
      %1592 = vst.msk [vmem:[%s528 + $0x4a] sm:$0x1] %vm1390, %v1554
      %1593 = vst.msk [vmem:[%s528 + $0x52] sm:$0x1] %vm1390, %v1556
      %1594 = vst.msk [vmem:[%s528 + $0x5a] sm:$0x1] %vm1390, %v1558
      %1595 = vst.msk [vmem:[%s528 + $0x62] sm:$0x1] %vm1390, %v1560
      %1596 = vst.msk [vmem:[%s528 + $0x6a] sm:$0x1] %vm1390, %v1562
      %1597 = vst.msk [vmem:[%s528 + $0x72] sm:$0x1] %vm1390, %v1564
      %1598 = vst.msk [vmem:[%s528 + $0x7a] sm:$0x1] %vm1390, %v1566
      %1599 = vrot.lane.b32.xlu0 %v1410, 95
      %v1600 = vpop.permute.xlu0 %1599
      %1601 = vrot.lane.b32.xlu0 %v1414, 95
      %v1602 = vpop.permute.xlu0 %1601
      %1603 = vrot.lane.b32.xlu0 %v1418, 95
      %v1604 = vpop.permute.xlu0 %1603
      %1605 = vrot.lane.b32.xlu0 %v1422, 95
      %v1606 = vpop.permute.xlu0 %1605
      %1607 = vrot.lane.b32.xlu0 %v1426, 95
      %v1608 = vpop.permute.xlu0 %1607
      %1609 = vrot.lane.b32.xlu0 %v1430, 95
      %v1610 = vpop.permute.xlu0 %1609
      %1611 = vrot.lane.b32.xlu0 %v1434, 95
      %v1612 = vpop.permute.xlu0 %1611
      %1613 = vrot.lane.b32.xlu0 %v1438, 95
      %v1614 = vpop.permute.xlu0 %1613
      %1615 = vrot.lane.b32.xlu0 %v1442, 95
      %v1616 = vpop.permute.xlu0 %1615
      %1617 = vrot.lane.b32.xlu0 %v1446, 95
      %v1618 = vpop.permute.xlu0 %1617
      %1619 = vrot.lane.b32.xlu0 %v1450, 95
      %v1620 = vpop.permute.xlu0 %1619
      %1621 = vrot.lane.b32.xlu0 %v1454, 95
      %v1622 = vpop.permute.xlu0 %1621
      %1623 = vrot.lane.b32.xlu0 %v1458, 95
      %v1624 = vpop.permute.xlu0 %1623
      %1625 = vrot.lane.b32.xlu0 %v1462, 95
      %v1626 = vpop.permute.xlu0 %1625
      %1627 = vrot.lane.b32.xlu0 %v1466, 95
      %v1628 = vpop.permute.xlu0 %1627
      %1629 = vrot.lane.b32.xlu0 %v1470, 95
      %v1630 = vpop.permute.xlu0 %1629
      %1647 = vst.msk [vmem:[%s528 + $0x3] sm:$0x1] %vm1390, %v1600
      %1648 = vst.msk [vmem:[%s528 + $0xb] sm:$0x1] %vm1390, %v1602
      %1649 = vst.msk [vmem:[%s528 + $0x13] sm:$0x1] %vm1390, %v1604
      %1650 = vst.msk [vmem:[%s528 + $0x1b] sm:$0x1] %vm1390, %v1606
      %1651 = vst.msk [vmem:[%s528 + $0x23] sm:$0x1] %vm1390, %v1608
      %1652 = vst.msk [vmem:[%s528 + $0x2b] sm:$0x1] %vm1390, %v1610
      %1653 = vst.msk [vmem:[%s528 + $0x33] sm:$0x1] %vm1390, %v1612
      %1654 = vst.msk [vmem:[%s528 + $0x3b] sm:$0x1] %vm1390, %v1614
      %1655 = vst.msk [vmem:[%s528 + $0x43] sm:$0x1] %vm1390, %v1616
      %1656 = vst.msk [vmem:[%s528 + $0x4b] sm:$0x1] %vm1390, %v1618
      %1657 = vst.msk [vmem:[%s528 + $0x53] sm:$0x1] %vm1390, %v1620
      %1658 = vst.msk [vmem:[%s528 + $0x5b] sm:$0x1] %vm1390, %v1622
      %1659 = vst.msk [vmem:[%s528 + $0x63] sm:$0x1] %vm1390, %v1624
      %1660 = vst.msk [vmem:[%s528 + $0x6b] sm:$0x1] %vm1390, %v1626
      %1661 = vst.msk [vmem:[%s528 + $0x73] sm:$0x1] %vm1390, %v1628
      %1662 = vst.msk [vmem:[%s528 + $0x7b] sm:$0x1] %vm1390, %v1630
      %1663 = vrot.lane.b32.xlu0 %v1410, 84
      %v1664 = vpop.permute.xlu0 %1663
      %1665 = vrot.lane.b32.xlu0 %v1414, 84
      %v1666 = vpop.permute.xlu0 %1665
      %1667 = vrot.lane.b32.xlu0 %v1418, 84
      %v1668 = vpop.permute.xlu0 %1667
      %1669 = vrot.lane.b32.xlu0 %v1422, 84
      %v1670 = vpop.permute.xlu0 %1669
      %1671 = vrot.lane.b32.xlu0 %v1426, 84
      %v1672 = vpop.permute.xlu0 %1671
      %1673 = vrot.lane.b32.xlu0 %v1430, 84
      %v1674 = vpop.permute.xlu0 %1673
      %1675 = vrot.lane.b32.xlu0 %v1434, 84
      %v1676 = vpop.permute.xlu0 %1675
      %1677 = vrot.lane.b32.xlu0 %v1438, 84
      %v1678 = vpop.permute.xlu0 %1677
      %1679 = vrot.lane.b32.xlu0 %v1442, 84
      %v1680 = vpop.permute.xlu0 %1679
      %1681 = vrot.lane.b32.xlu0 %v1446, 84
      %v1682 = vpop.permute.xlu0 %1681
      %1683 = vrot.lane.b32.xlu0 %v1450, 84
      %v1684 = vpop.permute.xlu0 %1683
      %1685 = vrot.lane.b32.xlu0 %v1454, 84
      %v1686 = vpop.permute.xlu0 %1685
      %1687 = vrot.lane.b32.xlu0 %v1458, 84
      %v1688 = vpop.permute.xlu0 %1687
      %1689 = vrot.lane.b32.xlu0 %v1462, 84
      %v1690 = vpop.permute.xlu0 %1689
      %1691 = vrot.lane.b32.xlu0 %v1466, 84
      %v1692 = vpop.permute.xlu0 %1691
      %1693 = vrot.lane.b32.xlu0 %v1470, 84
      %v1694 = vpop.permute.xlu0 %1693
      %1711 = vst.msk [vmem:[%s528 + $0x4] sm:$0x1] %vm1390, %v1664
      %1712 = vst.msk [vmem:[%s528 + $0xc] sm:$0x1] %vm1390, %v1666
      %1713 = vst.msk [vmem:[%s528 + $0x14] sm:$0x1] %vm1390, %v1668
      %1714 = vst.msk [vmem:[%s528 + $0x1c] sm:$0x1] %vm1390, %v1670
      %1715 = vst.msk [vmem:[%s528 + $0x24] sm:$0x1] %vm1390, %v1672
      %1716 = vst.msk [vmem:[%s528 + $0x2c] sm:$0x1] %vm1390, %v1674
      %1717 = vst.msk [vmem:[%s528 + $0x34] sm:$0x1] %vm1390, %v1676
      %1718 = vst.msk [vmem:[%s528 + $0x3c] sm:$0x1] %vm1390, %v1678
      %1719 = vst.msk [vmem:[%s528 + $0x44] sm:$0x1] %vm1390, %v1680
      %1720 = vst.msk [vmem:[%s528 + $0x4c] sm:$0x1] %vm1390, %v1682
      %1721 = vst.msk [vmem:[%s528 + $0x54] sm:$0x1] %vm1390, %v1684
      %1722 = vst.msk [vmem:[%s528 + $0x5c] sm:$0x1] %vm1390, %v1686
      %1723 = vst.msk [vmem:[%s528 + $0x64] sm:$0x1] %vm1390, %v1688
      %1724 = vst.msk [vmem:[%s528 + $0x6c] sm:$0x1] %vm1390, %v1690
      %1725 = vst.msk [vmem:[%s528 + $0x74] sm:$0x1] %vm1390, %v1692
      %1726 = vst.msk [vmem:[%s528 + $0x7c] sm:$0x1] %vm1390, %v1694
      %1727 = vrot.lane.b32.xlu0 %v1410, 73
      %v1728 = vpop.permute.xlu0 %1727
      %1729 = vrot.lane.b32.xlu0 %v1414, 73
      %v1730 = vpop.permute.xlu0 %1729
      %1731 = vrot.lane.b32.xlu0 %v1418, 73
      %v1732 = vpop.permute.xlu0 %1731
      %1733 = vrot.lane.b32.xlu0 %v1422, 73
      %v1734 = vpop.permute.xlu0 %1733
      %1735 = vrot.lane.b32.xlu0 %v1426, 73
      %v1736 = vpop.permute.xlu0 %1735
      %1737 = vrot.lane.b32.xlu0 %v1430, 73
      %v1738 = vpop.permute.xlu0 %1737
      %1739 = vrot.lane.b32.xlu0 %v1434, 73
      %v1740 = vpop.permute.xlu0 %1739
      %1741 = vrot.lane.b32.xlu0 %v1438, 73
      %v1742 = vpop.permute.xlu0 %1741
      %1743 = vrot.lane.b32.xlu0 %v1442, 73
      %v1744 = vpop.permute.xlu0 %1743
      %1745 = vrot.lane.b32.xlu0 %v1446, 73
      %v1746 = vpop.permute.xlu0 %1745
      %1747 = vrot.lane.b32.xlu0 %v1450, 73
      %v1748 = vpop.permute.xlu0 %1747
      %1749 = vrot.lane.b32.xlu0 %v1454, 73
      %v1750 = vpop.permute.xlu0 %1749
      %1751 = vrot.lane.b32.xlu0 %v1458, 73
      %v1752 = vpop.permute.xlu0 %1751
      %1753 = vrot.lane.b32.xlu0 %v1462, 73
      %v1754 = vpop.permute.xlu0 %1753
      %1755 = vrot.lane.b32.xlu0 %v1466, 73
      %v1756 = vpop.permute.xlu0 %1755
      %1757 = vrot.lane.b32.xlu0 %v1470, 73
      %v1758 = vpop.permute.xlu0 %1757
      %1775 = vst.msk [vmem:[%s528 + $0x5] sm:$0x1] %vm1390, %v1728
      %1776 = vst.msk [vmem:[%s528 + $0xd] sm:$0x1] %vm1390, %v1730
      %1777 = vst.msk [vmem:[%s528 + $0x15] sm:$0x1] %vm1390, %v1732
      %1778 = vst.msk [vmem:[%s528 + $0x1d] sm:$0x1] %vm1390, %v1734
      %1779 = vst.msk [vmem:[%s528 + $0x25] sm:$0x1] %vm1390, %v1736
      %1780 = vst.msk [vmem:[%s528 + $0x2d] sm:$0x1] %vm1390, %v1738
      %1781 = vst.msk [vmem:[%s528 + $0x35] sm:$0x1] %vm1390, %v1740
      %1782 = vst.msk [vmem:[%s528 + $0x3d] sm:$0x1] %vm1390, %v1742
      %1783 = vst.msk [vmem:[%s528 + $0x45] sm:$0x1] %vm1390, %v1744
      %1784 = vst.msk [vmem:[%s528 + $0x4d] sm:$0x1] %vm1390, %v1746
      %1785 = vst.msk [vmem:[%s528 + $0x55] sm:$0x1] %vm1390, %v1748
      %1786 = vst.msk [vmem:[%s528 + $0x5d] sm:$0x1] %vm1390, %v1750
      %1787 = vst.msk [vmem:[%s528 + $0x65] sm:$0x1] %vm1390, %v1752
      %1788 = vst.msk [vmem:[%s528 + $0x6d] sm:$0x1] %vm1390, %v1754
      %1789 = vst.msk [vmem:[%s528 + $0x75] sm:$0x1] %vm1390, %v1756
      %1790 = vst.msk [vmem:[%s528 + $0x7d] sm:$0x1] %vm1390, %v1758
      %1791 = vrot.lane.b32.xlu0 %v1410, 62
      %v1792 = vpop.permute.xlu0 %1791
      %1793 = vrot.lane.b32.xlu0 %v1414, 62
      %v1794 = vpop.permute.xlu0 %1793
      %1795 = vrot.lane.b32.xlu0 %v1418, 62
      %v1796 = vpop.permute.xlu0 %1795
      %1797 = vrot.lane.b32.xlu0 %v1422, 62
      %v1798 = vpop.permute.xlu0 %1797
      %1799 = vrot.lane.b32.xlu0 %v1426, 62
      %v1800 = vpop.permute.xlu0 %1799
      %1801 = vrot.lane.b32.xlu0 %v1430, 62
      %v1802 = vpop.permute.xlu0 %1801
      %1803 = vrot.lane.b32.xlu0 %v1434, 62
      %v1804 = vpop.permute.xlu0 %1803
      %1805 = vrot.lane.b32.xlu0 %v1438, 62
      %v1806 = vpop.permute.xlu0 %1805
      %1807 = vrot.lane.b32.xlu0 %v1442, 62
      %v1808 = vpop.permute.xlu0 %1807
      %1809 = vrot.lane.b32.xlu0 %v1446, 62
      %v1810 = vpop.permute.xlu0 %1809
      %1811 = vrot.lane.b32.xlu0 %v1450, 62
      %v1812 = vpop.permute.xlu0 %1811
      %1813 = vrot.lane.b32.xlu0 %v1454, 62
      %v1814 = vpop.permute.xlu0 %1813
      %1815 = vrot.lane.b32.xlu0 %v1458, 62
      %v1816 = vpop.permute.xlu0 %1815
      %1817 = vrot.lane.b32.xlu0 %v1462, 62
      %v1818 = vpop.permute.xlu0 %1817
      %1819 = vrot.lane.b32.xlu0 %v1466, 62
      %v1820 = vpop.permute.xlu0 %1819
      %1821 = vrot.lane.b32.xlu0 %v1470, 62
      %v1822 = vpop.permute.xlu0 %1821
      %1839 = vst.msk [vmem:[%s528 + $0x6] sm:$0x1] %vm1390, %v1792
      %1840 = vst.msk [vmem:[%s528 + $0xe] sm:$0x1] %vm1390, %v1794
      %1841 = vst.msk [vmem:[%s528 + $0x16] sm:$0x1] %vm1390, %v1796
      %1842 = vst.msk [vmem:[%s528 + $0x1e] sm:$0x1] %vm1390, %v1798
      %1843 = vst.msk [vmem:[%s528 + $0x26] sm:$0x1] %vm1390, %v1800
      %1844 = vst.msk [vmem:[%s528 + $0x2e] sm:$0x1] %vm1390, %v1802
      %1845 = vst.msk [vmem:[%s528 + $0x36] sm:$0x1] %vm1390, %v1804
      %1846 = vst.msk [vmem:[%s528 + $0x3e] sm:$0x1] %vm1390, %v1806
      %1847 = vst.msk [vmem:[%s528 + $0x46] sm:$0x1] %vm1390, %v1808
      %1848 = vst.msk [vmem:[%s528 + $0x4e] sm:$0x1] %vm1390, %v1810
      %1849 = vst.msk [vmem:[%s528 + $0x56] sm:$0x1] %vm1390, %v1812
      %1850 = vst.msk [vmem:[%s528 + $0x5e] sm:$0x1] %vm1390, %v1814
      %1851 = vst.msk [vmem:[%s528 + $0x66] sm:$0x1] %vm1390, %v1816
      %1852 = vst.msk [vmem:[%s528 + $0x6e] sm:$0x1] %vm1390, %v1818
      %1853 = vst.msk [vmem:[%s528 + $0x76] sm:$0x1] %vm1390, %v1820
      %1854 = vst.msk [vmem:[%s528 + $0x7e] sm:$0x1] %vm1390, %v1822
      %1855 = vrot.lane.b32.xlu0 %v1410, 51
      %v1856 = vpop.permute.xlu0 %1855
      %1857 = vrot.lane.b32.xlu0 %v1414, 51
      %v1858 = vpop.permute.xlu0 %1857
      %1859 = vrot.lane.b32.xlu0 %v1418, 51
      %v1860 = vpop.permute.xlu0 %1859
      %1861 = vrot.lane.b32.xlu0 %v1422, 51
      %v1862 = vpop.permute.xlu0 %1861
      %1863 = vrot.lane.b32.xlu0 %v1426, 51
      %v1864 = vpop.permute.xlu0 %1863
      %1865 = vrot.lane.b32.xlu0 %v1430, 51
      %v1866 = vpop.permute.xlu0 %1865
      %1867 = vrot.lane.b32.xlu0 %v1434, 51
      %v1868 = vpop.permute.xlu0 %1867
      %1869 = vrot.lane.b32.xlu0 %v1438, 51
      %v1870 = vpop.permute.xlu0 %1869
      %1871 = vrot.lane.b32.xlu0 %v1442, 51
      %v1872 = vpop.permute.xlu0 %1871
      %1873 = vrot.lane.b32.xlu0 %v1446, 51
      %v1874 = vpop.permute.xlu0 %1873
      %1875 = vrot.lane.b32.xlu0 %v1450, 51
      %v1876 = vpop.permute.xlu0 %1875
      %1877 = vrot.lane.b32.xlu0 %v1454, 51
      %v1878 = vpop.permute.xlu0 %1877
      %1879 = vrot.lane.b32.xlu0 %v1458, 51
      %v1880 = vpop.permute.xlu0 %1879
      %1881 = vrot.lane.b32.xlu0 %v1462, 51
      %v1882 = vpop.permute.xlu0 %1881
      %1883 = vrot.lane.b32.xlu0 %v1466, 51
      %v1884 = vpop.permute.xlu0 %1883
      %1885 = vrot.lane.b32.xlu0 %v1470, 51
      %v1886 = vpop.permute.xlu0 %1885
      %1903 = vst.msk [vmem:[%s528 + $0x7] sm:$0x1] %vm1390, %v1856
      %1904 = vst.msk [vmem:[%s528 + $0xf] sm:$0x1] %vm1390, %v1858
      %1905 = vst.msk [vmem:[%s528 + $0x17] sm:$0x1] %vm1390, %v1860
      %1906 = vst.msk [vmem:[%s528 + $0x1f] sm:$0x1] %vm1390, %v1862
      %1907 = vst.msk [vmem:[%s528 + $0x27] sm:$0x1] %vm1390, %v1864
      %1908 = vst.msk [vmem:[%s528 + $0x2f] sm:$0x1] %vm1390, %v1866
      %1909 = vst.msk [vmem:[%s528 + $0x37] sm:$0x1] %vm1390, %v1868
      %1910 = vst.msk [vmem:[%s528 + $0x3f] sm:$0x1] %vm1390, %v1870
      %1911 = vst.msk [vmem:[%s528 + $0x47] sm:$0x1] %vm1390, %v1872
      %1912 = vst.msk [vmem:[%s528 + $0x4f] sm:$0x1] %vm1390, %v1874
      %1913 = vst.msk [vmem:[%s528 + $0x57] sm:$0x1] %vm1390, %v1876
      %1914 = vst.msk [vmem:[%s528 + $0x5f] sm:$0x1] %vm1390, %v1878
      %1915 = vst.msk [vmem:[%s528 + $0x67] sm:$0x1] %vm1390, %v1880
      %1916 = vst.msk [vmem:[%s528 + $0x6f] sm:$0x1] %vm1390, %v1882
      %1917 = vst.msk [vmem:[%s528 + $0x77] sm:$0x1] %vm1390, %v1884
      %1918 = vst.msk [vmem:[%s528 + $0x7f] sm:$0x1] %vm1390, %v1886
      %p1919 = scmp.lt.s32.totalorder %s30, 1
      %s1920 = scalar_select %p1919, %s30, 1
      %p1921 = scmp.lt.s32.totalorder %s31, 0
      %s1922 = scalar_select %p1921, %s31, 0
      %s1923 = smul.addr %s1920, 16
      %s1924 = sadd.s32 %s1922, %s1923
      %s1925 = smul.addr %s1924, 8
      %s1926 = scalar_lea.vmem %s15, %s1925
      // Predicated region
      $region81: #{tpu_custom_call.1} parent=79 // pred_check
        %p1927 = pneg %p380
      $region82: #{tpu_custom_call.1} parent=79 // pred_check_branch
        %1929 = sbr.rel (%p1927) target = $region84
      $region83: #{tpu_custom_call.1} parent=79 // pred_region
        _
      $region84: #{tpu_custom_call.1} parent=79 // pred_fallthru
        _
    $region80: #{tpu_custom_call.1} parent=5 // pred_fallthru
      _
    %p1930 = scmp.le.s32.totalorder 2, %s21
    // Predicated region
    $region85: #{tpu_custom_call.1} parent=5 // pred_check
      %p1931 = pneg %p1930
    $region86: #{tpu_custom_call.1} parent=5 // pred_check_branch
      %1933 = sbr.rel (%p1931) target = $region88
    $region87: #{tpu_custom_call.1} parent=5 // pred_region
      %s1934 = ssub.s32 %s21, 2
      // Predicated region
      $region89: #{tpu_custom_call.1} parent=87 // pred_check
        %p1935 = pneg %p386
      $region90: #{tpu_custom_call.1} parent=87 // pred_check_branch
        %1937 = sbr.rel (%p1935) target = $region92
      $region91: #{tpu_custom_call.1} parent=87 // pred_region
        %p1938 = scmp.lt.s32.totalorder %s32, 1
        %s1939 = scalar_select %p1938, %s32, 1
        %p1940 = scmp.lt.s32.totalorder %s33, 0
        %s1941 = scalar_select %p1940, %s33, 0
        %s1942 = smul.addr %s1939, 16
        %s1943 = sadd.s32 %s1941, %s1942
        %s1944 = smul.addr %s1943, 8
        %s1945 = scalar_lea.vmem %s15, %s1944
      $region92: #{tpu_custom_call.1} parent=87 // pred_fallthru
        _
    $region88: #{tpu_custom_call.1} parent=5 // pred_fallthru
      _
  $region6: #{tpu_custom_call.1} parent=0 // loop_footer
    %s25 = sadd.s32 1, %s21
  $region7: #{tpu_custom_call.1} parent=0 // loop_footer_branch
    %20 = sbr.rel target = $region3
  $region8: #{tpu_custom_call.1} parent=0 // loop_exit
    _

</llo_original>
